<compile_context>
chip_gen: v7x
topology: tpu7x:2x2x1
jax: 0.10.0
libtpu: 0.0.40
codegen_flags: <defaults>
</compile_context>

<pallas_src>
import functools

import jax
import jax.numpy as jnp
from jax.experimental import pallas as pl
from jax.experimental.pallas import tpu as pltpu


# ---------------------------------------------------------------------------
# Pallas kernel: fused 2-layer MLP (Conv1d+BN+ReLU) + ctr_reg head, NCW layout
# ---------------------------------------------------------------------------
def _vote_mlp_kernel(
    feat_ref,     # (1, Cin, TN)   input features tile (NCW), compute dtype
    w1_ref,       # (C1, Cin)      conv1 weight with BN1 scale folded in
    b1_ref,       # (C1, 1)        folded BN1 shift (f32)
    w2_ref,       # (C2, C1)       conv2 weight with BN2 scale folded in
    b2_ref,       # (C2, 1)        folded BN2 shift (f32)
    wr_ref,       # (8, C2)        ctr_reg weight, zero-padded 3 -> 8 rows
    br_ref,       # (8, 1)         ctr_reg bias, zero-padded
    nf_out_ref,   # (1, C2, TN)    new_features tile (NCW, f32)
    ctr_out_ref,  # (1, 8, TN)     ctr_offsets tile (NCW, f32, padded rows)
):
    cd = w1_ref.dtype  # compute dtype at the MXU (bf16 by default)
    x = feat_ref[0]    # (Cin, TN)

    # Layer 1: Conv1d(k=1, no bias) -> BN (scale folded into w, shift added) -> ReLU
    h1 = jnp.dot(w1_ref[...], x, preferred_element_type=jnp.float32)
    h1 = jnp.maximum(h1 + b1_ref[...], 0.0)                   # f32 accumulator

    # Layer 2: Conv1d(k=1, no bias) -> BN (folded) -> ReLU
    h2 = jnp.dot(w2_ref[...], h1.astype(cd), preferred_element_type=jnp.float32)
    h2 = jnp.maximum(h2 + b2_ref[...], 0.0)                   # f32 accumulator
    nf_out_ref[0] = h2.astype(nf_out_ref.dtype)               # lane-dense store

    # ctr_reg: Conv1d(k=1, bias=True), 8 padded output rows (only 3 are real)
    ctr = jnp.dot(wr_ref[...], h2.astype(cd), preferred_element_type=jnp.float32)
    ctr_out_ref[0] = (ctr + br_ref[...]).astype(ctr_out_ref.dtype)


def vote_layer_forward(xyz, features_ncw, params, *, tile_n=2048,
                       compute_dtype=jnp.bfloat16):
    """xyz: (B, N, 3) f32; features_ncw: (B, Cin, N) f32 (PyTorch NCW layout).

    Returns (new_xyz (B,N,3), new_features (B,C2,N), ctr_offsets (B,N,3)),
    matching the PyTorch Vote_layer.forward return layouts.
    """
    B, Cin, N = features_ncw.shape
    w1, s1, b1, w2, s2, b2, wr, br, mo = params
    C1 = w1.shape[1]
    C2 = w2.shape[1]

    # ---- tile selection: big tiles (HBM/step-overhead bound), lane-aligned,
    # ---- but keep >= 2 grid steps so both v7x TensorCores stay busy.
    t = min(int(tile_n), pl.cdiv(N, 128) * 128)
    t = max(128, (t // 128) * 128)
    if B * pl.cdiv(N, t) < 2:
        t = max(128, pl.cdiv(pl.cdiv(N, 2), 128) * 128)
    n_tiles = pl.cdiv(N, t)
    N_pad = n_tiles * t

    # ---- fold BN scale into conv weights once (tiny), transpose to (out, in),
    # ---- pad the 3-row ctr head to 8 sublanes, and cast to compute dtype.
    w1f = jnp.transpose(w1 * s1).astype(compute_dtype)          # (C1, Cin)
    w2f = jnp.transpose(w2 * s2).astype(compute_dtype)          # (C2, C1)
    b1c = jnp.transpose(b1).astype(jnp.float32)                 # (C1, 1)
    b2c = jnp.transpose(b2).astype(jnp.float32)                 # (C2, 1)
    wrf = jnp.pad(jnp.transpose(wr), ((0, 5), (0, 0))).astype(compute_dtype)  # (8, C2)
    brc = jnp.pad(jnp.transpose(br), ((0, 5), (0, 0))).astype(jnp.float32)    # (8, 1)

    feats = features_ncw.astype(compute_dtype)
    if N_pad != N:
        feats = jnp.pad(feats, ((0, 0), (0, 0), (0, N_pad - N)))

    grid = (B, n_tiles)

    def tile_map(b, n):
        return (b, 0, n)

    def full2d(b, n):
        return (0, 0)

    # ---- conservative VMEM working-set estimate; only override the scoped
    # ---- limit when it would exceed v5e's 16 MiB default (large-tile sweeps).
    itemsize_c = jnp.dtype(compute_dtype).itemsize
    bytes_per_step = (
        2 * Cin * t * itemsize_c          # double-buffered input tile
        + 2 * C2 * t * 4                  # double-buffered new_features tile
        + 2 * 8 * t * 4                   # double-buffered ctr tile
        + (C1 + C2) * t * 4               # in-kernel f32 activations (rough)
        + (C1 * Cin + C2 * C1 + 8 * C2) * itemsize_c
        + (C1 + C2 + 8) * 4
    )
    vmem_limit = None
    if 2 * bytes_per_step > (16 << 20):
        vmem_limit = int(min(64 << 20, 2 * bytes_per_step))

    nf_ncw, ctr_ncw_pad = pl.pallas_call(
        _vote_mlp_kernel,
        out_shape=(
            jax.ShapeDtypeStruct((B, C2, N_pad), jnp.float32),  # new_features (NCW)
            jax.ShapeDtypeStruct((B, 8, N_pad), jnp.float32),   # ctr_offsets (padded)
        ),
        grid=grid,
        in_specs=[
            pl.BlockSpec((1, Cin, t), tile_map),
            pl.BlockSpec((C1, Cin), full2d),
            pl.BlockSpec((C1, 1), full2d),
            pl.BlockSpec((C2, C1), full2d),
            pl.BlockSpec((C2, 1), full2d),
            pl.BlockSpec((8, C2), full2d),
            pl.BlockSpec((8, 1), full2d),
        ],
        out_specs=(
            pl.BlockSpec((1, C2, t), tile_map),
            pl.BlockSpec((1, 8, t), tile_map),
        ),
        compiler_params=pltpu.CompilerParams(
            dimension_semantics=("parallel", "parallel"),
            vmem_limit_bytes=vmem_limit,
        ),
    )(feats, w1f, b1c, w2f, b2c, wrf, brc)

    nf_ncw = nf_ncw[:, :, :N]
    ctr_ncw = ctr_ncw_pad[:, :3, :N]

    # Tiny (B, N, 3) tail: lane-sparse by nature, stays in XLA (fuses with the
    # transpose). Offset limiting exactly as written in the PyTorch forward:
    #   lim = where(ctr < min_offset, min_offset, ctr)
    #   lim = where(lim > -min_offset, -min_offset, lim)
    ctr_offsets = jnp.transpose(ctr_ncw, (0, 2, 1))  # (B, N, 3)
    mo_b = mo.reshape(1, 1, 3)
    lim = jnp.where(ctr_offsets < mo_b, mo_b, ctr_offsets)
    lim = jnp.where(lim > -mo_b, -mo_b, lim)
    new_xyz = xyz + lim

    return new_xyz, nf_ncw, ctr_offsets


# ---------------------------------------------------------------------------
# Deterministic parameter construction (mirrors Vote_layer.__init__ shapes)
# ---------------------------------------------------------------------------
def make_params(key, pre_channel, mlp_list, max_translate_range, eps=1e-5):
    assert len(mlp_list) == 2, "this synthetic kernel is specialized to 2 MLP layers"
    keys = jax.random.split(key, 8)
    c_in, c1, c2 = pre_channel, mlp_list[0], mlp_list[1]

    # Conv1d(kernel_size=1, bias=False) weights, stored as (in, out) matmul matrices.
    w1 = jax.random.normal(keys[0], (c_in, c1), jnp.float32) * 0.1
    w2 = jax.random.normal(keys[1], (c1, c2), jnp.float32) * 0.1

    # BatchNorm1d params + running stats (inference mode), folded to scale/shift.
    def bn_fold(kg, kb, c):
        gamma = 1.0 + 0.1 * jax.random.normal(kg, (1, c), jnp.float32)
        beta = 0.1 * jax.random.normal(kb, (1, c), jnp.float32)
        mean = 0.05 * jax.random.normal(jax.random.fold_in(kg, 7), (1, c), jnp.float32)
        var = 1.0 + 0.1 * jax.random.uniform(jax.random.fold_in(kb, 9), (1, c), jnp.float32)
        scale = gamma / jnp.sqrt(var + eps)
        shift = beta - mean * scale
        return scale, shift

    s1, b1 = bn_fold(keys[2], keys[3], c1)
    s2, b2 = bn_fold(keys[4], keys[5], c2)

    # ctr_reg: Conv1d(pre_channel_last, 3, kernel_size=1, bias=True)
    wr = jax.random.normal(keys[6], (c2, 3), jnp.float32) * 0.1
    br = jax.random.normal(keys[7], (1, 3), jnp.float32) * 0.1

    mo = jnp.asarray(max_translate_range, jnp.float32).reshape(1, 3)
    return (w1, s1, b1, w2, s2, b2, wr, br, mo)


# Pure-JAX reference of the PyTorch forward (for verification, f32 throughout)
def vote_layer_reference(xyz, features_ncw, params):
    w1, s1, b1, w2, s2, b2, wr, br, mo = params
    x = jnp.transpose(features_ncw, (0, 2, 1))                      # (B,N,Cin)
    h = jnp.maximum(jnp.einsum("bnc,cd->bnd", x, w1) * s1 + b1, 0.0)
    h = jnp.maximum(jnp.einsum("bnc,cd->bnd", h, w2) * s2 + b2, 0.0)
    ctr = jnp.einsum("bnc,cd->bnd", h, wr) + br                     # (B,N,3)
    mo_b = mo.reshape(1, 1, 3)
    lim = jnp.where(ctr < mo_b, mo_b, ctr)
    lim = jnp.where(lim > -mo_b, -mo_b, lim)
    return xyz + lim, jnp.transpose(h, (0, 2, 1)), ctr


if __name__ == "__main__":
    import numpy as np

    B, N = 2, 1024
    pre_channel = 32
    mlp_list = [64, 32]
    max_translate_range = [3.0, 3.0, 2.0]

    key = jax.random.PRNGKey(0)
    k_xyz, k_feat, k_par = jax.random.split(key, 3)

    xyz = jax.random.normal(k_xyz, (B, N, 3), jnp.float32) * 10.0
    features = jax.random.normal(k_feat, (B, pre_channel, N), jnp.float32)  # NCW
    params = make_params(k_par, pre_channel, mlp_list, max_translate_range)

    # Default (perf) path: bf16 at the HBM/MXU boundary, f32 accumulation.
    fwd = jax.jit(functools.partial(vote_layer_forward, tile_n=2048))
    new_xyz, new_features, ctr_offsets = fwd(xyz, features, params)
    jax.block_until_ready((new_xyz, new_features, ctr_offsets))

    ref_xyz, ref_feat, ref_ctr = vote_layer_reference(xyz, features, params)
    np.testing.assert_allclose(np.asarray(new_xyz), np.asarray(ref_xyz), rtol=3e-2, atol=3e-2)
    np.testing.assert_allclose(np.asarray(new_features), np.asarray(ref_feat), rtol=3e-2, atol=3e-2)
    np.testing.assert_allclose(np.asarray(ctr_offsets), np.asarray(ref_ctr), rtol=3e-2, atol=3e-2)

    # f32 compute path with N not a multiple of the tile: exercises cdiv+padding.
    N2 = 1000
    xyz2 = xyz[:, :N2]
    feat2 = features[:, :, :N2]
    fwd32 = jax.jit(functools.partial(vote_layer_forward, tile_n=2048,
                                      compute_dtype=jnp.float32))
    out2 = fwd32(xyz2, feat2, params)
    jax.block_until_ready(out2)
    ref2 = vote_layer_reference(xyz2, feat2, params)
    for got, ref in zip(out2, ref2):
        np.testing.assert_allclose(np.asarray(got), np.asarray(ref), rtol=1e-4, atol=1e-4)

    print("KERNEL_OK")
</pallas_src>

<mosaic_0001>
module attributes {stable_mosaic.version = 11 : i64} {
  func.func @_vote_mlp_kernel(%arg0: i32, %arg1: i32, %arg2: memref<1x32x1024xbf16, #tpu.memory_space<vmem>>, %arg3: memref<64x32xbf16, #tpu.memory_space<vmem>>, %arg4: memref<64x1xf32, #tpu.memory_space<vmem>>, %arg5: memref<32x64xbf16, #tpu.memory_space<vmem>>, %arg6: memref<32x1xf32, #tpu.memory_space<vmem>>, %arg7: memref<8x32xbf16, #tpu.memory_space<vmem>>, %arg8: memref<8x1xf32, #tpu.memory_space<vmem>>, %arg9: memref<1x32x1024xf32, #tpu.memory_space<vmem>>, %arg10: memref<1x8x1024xf32, #tpu.memory_space<vmem>>) attributes {dimension_semantics = [#tpu.dimension_semantics<parallel>, #tpu.dimension_semantics<parallel>], iteration_bounds = array<i64: 2, 1>, scalar_prefetch = 0 : i64, scratch_operands = 0 : i64, tpu.core_type = #tpu.core_type<tc>, window_params = [{transform_indices = @transform_0, window_bounds = array<i64: 1, 32, 1024>}, {pipeline_mode = #tpu.pipeline_mode<synchronous>, transform_indices = @transform_1, window_bounds = array<i64: 64, 32>}, {pipeline_mode = #tpu.pipeline_mode<synchronous>, transform_indices = @transform_2, window_bounds = array<i64: 64, 1>}, {pipeline_mode = #tpu.pipeline_mode<synchronous>, transform_indices = @transform_3, window_bounds = array<i64: 32, 64>}, {pipeline_mode = #tpu.pipeline_mode<synchronous>, transform_indices = @transform_4, window_bounds = array<i64: 32, 1>}, {pipeline_mode = #tpu.pipeline_mode<synchronous>, transform_indices = @transform_5, window_bounds = array<i64: 8, 32>}, {pipeline_mode = #tpu.pipeline_mode<synchronous>, transform_indices = @transform_6, window_bounds = array<i64: 8, 1>}, {transform_indices = @transform_7, window_bounds = array<i64: 1, 32, 1024>}, {transform_indices = @transform_8, window_bounds = array<i64: 1, 8, 1024>}]} {
    %c0 = arith.constant 0 : index
    %c0_0 = arith.constant 0 : index
    %c0_1 = arith.constant 0 : index
    %0 = vector.load %arg2[%c0, %c0_0, %c0_1] : memref<1x32x1024xbf16, #tpu.memory_space<vmem>>, vector<1x32x1024xbf16>
    %1 = vector.shape_cast %0 : vector<1x32x1024xbf16> to vector<32x1024xbf16>
    %c0_2 = arith.constant 0 : index
    %c0_3 = arith.constant 0 : index
    %2 = vector.load %arg3[%c0_2, %c0_3] : memref<64x32xbf16, #tpu.memory_space<vmem>>, vector<64x32xbf16>
    %cst = arith.constant dense<0.000000e+00> : vector<64x1024xf32>
    %3 = tpu.matmul %2, %1, %cst {dimension_numbers = #tpu.dot_dimension_numbers<[1], [0], [0], [1], [0, 0, 1, 1], [], []>} : vector<64x32xbf16>, vector<32x1024xbf16>, vector<64x1024xf32> -> vector<64x1024xf32>
    %c0_4 = arith.constant 0 : index
    %c0_5 = arith.constant 0 : index
    %4 = vector.load %arg4[%c0_4, %c0_5] : memref<64x1xf32, #tpu.memory_space<vmem>>, vector<64x1xf32>
    %5 = vector.broadcast %4 : vector<64x1xf32> to vector<64x1024xf32>
    %6 = arith.addf %3, %5 : vector<64x1024xf32>
    %cst_6 = arith.constant 0.000000e+00 : f32
    %7 = vector.broadcast %cst_6 : f32 to vector<64x1024xf32>
    %8 = arith.maximumf %6, %7 : vector<64x1024xf32>
    %c0_7 = arith.constant 0 : index
    %c0_8 = arith.constant 0 : index
    %9 = vector.load %arg5[%c0_7, %c0_8] : memref<32x64xbf16, #tpu.memory_space<vmem>>, vector<32x64xbf16>
    %10 = arith.truncf %8 : vector<64x1024xf32> to vector<64x1024xbf16>
    %cst_9 = arith.constant dense<0.000000e+00> : vector<32x1024xf32>
    %11 = tpu.matmul %9, %10, %cst_9 {dimension_numbers = #tpu.dot_dimension_numbers<[1], [0], [0], [1], [0, 0, 1, 1], [], []>} : vector<32x64xbf16>, vector<64x1024xbf16>, vector<32x1024xf32> -> vector<32x1024xf32>
    %c0_10 = arith.constant 0 : index
    %c0_11 = arith.constant 0 : index
    %12 = vector.load %arg6[%c0_10, %c0_11] : memref<32x1xf32, #tpu.memory_space<vmem>>, vector<32x1xf32>
    %13 = vector.broadcast %12 : vector<32x1xf32> to vector<32x1024xf32>
    %14 = arith.addf %11, %13 : vector<32x1024xf32>
    %cst_12 = arith.constant 0.000000e+00 : f32
    %15 = vector.broadcast %cst_12 : f32 to vector<32x1024xf32>
    %16 = arith.maximumf %14, %15 : vector<32x1024xf32>
    %c0_13 = arith.constant 0 : index
    %c0_14 = arith.constant 0 : index
    %c0_15 = arith.constant 0 : index
    %17 = vector.load %arg9[%c0_13, %c0_14, %c0_15] : memref<1x32x1024xf32, #tpu.memory_space<vmem>>, vector<1x32x1024xf32>
    %18 = vector.shape_cast %17 : vector<1x32x1024xf32> to vector<32x1024xf32>
    %19 = vector.shape_cast %16 : vector<32x1024xf32> to vector<1x32x1024xf32>
    tpu.vector_store %arg9[%c0_13, %c0_14, %c0_15], %19 {strides = array<i32>} : memref<1x32x1024xf32, #tpu.memory_space<vmem>>, vector<1x32x1024xf32>,
    %c0_16 = arith.constant 0 : index
    %c0_17 = arith.constant 0 : index
    %20 = vector.load %arg7[%c0_16, %c0_17] : memref<8x32xbf16, #tpu.memory_space<vmem>>, vector<8x32xbf16>
    %21 = arith.truncf %16 : vector<32x1024xf32> to vector<32x1024xbf16>
    %cst_18 = arith.constant dense<0.000000e+00> : vector<8x1024xf32>
    %22 = tpu.matmul %20, %21, %cst_18 {dimension_numbers = #tpu.dot_dimension_numbers<[1], [0], [0], [1], [0, 0, 1, 1], [], []>} : vector<8x32xbf16>, vector<32x1024xbf16>, vector<8x1024xf32> -> vector<8x1024xf32>
    %c0_19 = arith.constant 0 : index
    %c0_20 = arith.constant 0 : index
    %23 = vector.load %arg8[%c0_19, %c0_20] : memref<8x1xf32, #tpu.memory_space<vmem>>, vector<8x1xf32>
    %24 = vector.broadcast %23 : vector<8x1xf32> to vector<8x1024xf32>
    %25 = arith.addf %22, %24 : vector<8x1024xf32>
    %c0_21 = arith.constant 0 : index
    %c0_22 = arith.constant 0 : index
    %c0_23 = arith.constant 0 : index
    %26 = vector.load %arg10[%c0_21, %c0_22, %c0_23] : memref<1x8x1024xf32, #tpu.memory_space<vmem>>, vector<1x8x1024xf32>
    %27 = vector.shape_cast %26 : vector<1x8x1024xf32> to vector<8x1024xf32>
    %28 = vector.shape_cast %25 : vector<8x1024xf32> to vector<1x8x1024xf32>
    tpu.vector_store %arg10[%c0_21, %c0_22, %c0_23], %28 {strides = array<i32>} : memref<1x8x1024xf32, #tpu.memory_space<vmem>>, vector<1x8x1024xf32>,
    return
  }
  func.func @transform_0(%arg0: i32, %arg1: i32) -> (i32, i32, i32) {
    %c0_i32 = arith.constant 0 : i32
    %c0_i32_0 = arith.constant 0 : i32
    return %arg0, %c0_i32, %arg1 : i32, i32, i32
  }
  func.func @transform_1(%arg0: i32, %arg1: i32) -> (i32, i32) {
    %c0_i32 = arith.constant 0 : i32
    %c0_i32_0 = arith.constant 0 : i32
    %c0_i32_1 = arith.constant 0 : i32
    return %c0_i32, %c0_i32_0 : i32, i32
  }
  func.func @transform_2(%arg0: i32, %arg1: i32) -> (i32, i32) {
    %c0_i32 = arith.constant 0 : i32
    %c0_i32_0 = arith.constant 0 : i32
    %c0_i32_1 = arith.constant 0 : i32
    return %c0_i32, %c0_i32_0 : i32, i32
  }
  func.func @transform_3(%arg0: i32, %arg1: i32) -> (i32, i32) {
    %c0_i32 = arith.constant 0 : i32
    %c0_i32_0 = arith.constant 0 : i32
    %c0_i32_1 = arith.constant 0 : i32
    return %c0_i32, %c0_i32_0 : i32, i32
  }
  func.func @transform_4(%arg0: i32, %arg1: i32) -> (i32, i32) {
    %c0_i32 = arith.constant 0 : i32
    %c0_i32_0 = arith.constant 0 : i32
    %c0_i32_1 = arith.constant 0 : i32
    return %c0_i32, %c0_i32_0 : i32, i32
  }
  func.func @transform_5(%arg0: i32, %arg1: i32) -> (i32, i32) {
    %c0_i32 = arith.constant 0 : i32
    %c0_i32_0 = arith.constant 0 : i32
    %c0_i32_1 = arith.constant 0 : i32
    return %c0_i32, %c0_i32_0 : i32, i32
  }
  func.func @transform_6(%arg0: i32, %arg1: i32) -> (i32, i32) {
    %c0_i32 = arith.constant 0 : i32
    %c0_i32_0 = arith.constant 0 : i32
    %c0_i32_1 = arith.constant 0 : i32
    return %c0_i32, %c0_i32_0 : i32, i32
  }
  func.func @transform_7(%arg0: i32, %arg1: i32) -> (i32, i32, i32) {
    %c0_i32 = arith.constant 0 : i32
    %c0_i32_0 = arith.constant 0 : i32
    return %arg0, %c0_i32, %arg1 : i32, i32, i32
  }
  func.func @transform_8(%arg0: i32, %arg1: i32) -> (i32, i32, i32) {
    %c0_i32 = arith.constant 0 : i32
    %c0_i32_0 = arith.constant 0 : i32
    return %arg0, %c0_i32, %arg1 : i32, i32, i32
  }
}

</mosaic_0001>

<llo_original>
// kernel: vote_layer_forward.1
$region0: #{vote_layer_forward.1}
  #allocation0 [shape = 'u32[]', space=smem, size = 0x4, offset = 0x4, fixed_abs, tag = 'smem constant byte address 0x4 - core index']
  #allocation1 [shape = 'u32[144,128]{1,0:T(1,128)}', space=vmem, size = 0x12000, scoped, tag = 'internal scratch']
  %s0 = inlined_call_operand.vmem [shape: bf16[2,32,1024], index: 0, kind: input, shape index: {}]
  %s1 = inlined_call_operand.vmem [shape: bf16[64,32], index: 1, kind: input, shape index: {}]
  %s2 = inlined_call_operand.vmem [shape: f32[64,1], index: 2, kind: input, shape index: {}]
  %s3 = inlined_call_operand.vmem [shape: bf16[32,64], index: 3, kind: input, shape index: {}]
  %s4 = inlined_call_operand.vmem [shape: f32[32,1], index: 4, kind: input, shape index: {}]
  %s5 = inlined_call_operand.vmem [shape: bf16[8,32], index: 5, kind: input, shape index: {}]
  %s6 = inlined_call_operand.vmem [shape: f32[8,1], index: 6, kind: input, shape index: {}]
  %s7 = inlined_call_operand.hbm [shape: f32[2,32,1024], index: 7, kind: output, shape index: {0}]
  %s8 = inlined_call_operand.vmem [shape: f32[2,8,1024], index: 8, kind: output, shape index: {1}]
  %9 = xla_tuple %s7, %s8
  %s10 = sld [smem:[#allocation0]]
  $region69: #{vote_layer_forward.1} parent=0
    _
  %s12 = ssub.s32 1, %s10
  %s13 = scalar_select 0, %s12, %s10
  $region1: #{vote_layer_forward.1} parent=0
    #allocation2 [shape = 'u8[262144]{0}', space=vmem, size = 0x40000, scoped, tag = 'output window, operand 0']
    #allocation3 [shape = 's32[2]{0}', space=sflag, size = 0x8, scoped, tag = 'scoped memory for vote_layer_forward.1']
    %14 = vsyncpa [#allocation3], 0
    %s15 = scalar_lea.sflag [#allocation3], 1
    %16 = vsyncpa %s15, 0
    loop: start=0, step=1, limit=4
    $region2: #{vote_layer_forward.1} parent=1 // loop_pre_header
      _
    $region3: #{vote_layer_forward.1} parent=1 // loop_header
      %s18 = sphi 0, %s22
      %p19 = scmp.ge.s32.totalorder %s18, 4
      %s25 = sphi 0, %s37
      %s26 = sphi 0, %s33
      %s27 = sphi 0, %s25
      %s28 = sphi 0, %s26
      %s29 = sphi 0, %s27
      %s30 = sphi 0, %s28
      %s42 = sphi 0, %s44
      %s45 = sphi 0, %s42
      %s46 = sphi 0, %s45
      %s62 = sphi 0, %s46
      %s66 = sphi 0, %s66
      %s68 = sphi 0, %s66
      %s69 = sphi 0, %s68
      %s83 = sphi 0, %s69
      %s87 = sphi 0, %s87
      %s89 = sphi 0, %s87
      %s90 = sphi 0, %s89
      %s104 = sphi 0, %s90
      %s108 = sphi 0, %s108
      %s110 = sphi 0, %s108
      %s111 = sphi 0, %s110
      %s125 = sphi 0, %s111
      %s129 = sphi 0, %s129
      %s131 = sphi 0, %s129
      %s132 = sphi 0, %s131
      %s146 = sphi 0, %s132
      %s150 = sphi 0, %s150
      %s152 = sphi 0, %s150
      %s153 = sphi 0, %s152
      %s167 = sphi 0, %s153
      %s171 = sphi 0, %s171
      %s173 = sphi 0, %s171
      %s174 = sphi 0, %s173
      %s188 = sphi 0, %s174
      %s196 = sphi 0, %s198
      %s199 = sphi 0, %s196
      %s200 = sphi 0, %s199
      %s216 = sphi 0, %s200
      %s224 = sphi 0, %s226
      %s227 = sphi 0, %s224
      %s228 = sphi 0, %s227
      %s244 = sphi 0, %s228
    $region4: #{vote_layer_forward.1} parent=1 // loop_header_branch
      %21 = sbr.rel (%p19) target = $region8
    $region5: #{vote_layer_forward.1} parent=1 // loop_body
      %s23 = ssub.s32 %s18, 1
      %s24 = ssub.s32 %s18, 2
      %s31 = sadd.s32 1, %s26
      %p32 = scmp.ge.s32.totalorder %s31, 1
      %s33 = scalar_select %p32, 0, %s31
      %s34 = sadd.s32 1, %s25
      %s35 = scalar_select %p32, %s34, %s25
      %p36 = scmp.ge.s32.totalorder %s35, 2
      %s37 = scalar_select %p36, 0, %s35
      %s38 = ssub.s32 %s25, %s37
      %s39 = ssub.s32 %s26, %s33
      %s40 = sor.u32 %s38, %s39
      %p41 = scmp.eq.s32.totalorder %s40, 0
      %s43 = sadd.s32 %s42, 1
      %s44 = scalar_select %p41, %s42, %s43
      %p47 = pneg %p41
      %p48 = scmp.eq.s32.totalorder %s18, 1
      %p49 = por %p47, %p48
      %p50 = scmp.ne.s32.totalorder %s42, %s45
      %p51 = scmp.eq.s32.totalorder %s18, 0
      %p52 = por %p50, %p51
      %p53 = scmp.ne.s32.totalorder %s42, %s45
      %p54 = scmp.eq.s32.totalorder %s23, 1
      %p55 = por %p53, %p54
      %p56 = scmp.ne.s32.totalorder %s45, %s46
      %p57 = scmp.eq.s32.totalorder %s23, 0
      %p58 = por %p56, %p57
      %p59 = scmp.ne.s32.totalorder %s45, %s46
      %p60 = scmp.eq.s32.totalorder %s24, 1
      %p61 = por %p59, %p60
      %p63 = scmp.ne.s32.totalorder %s46, %s62
      %p64 = scmp.eq.s32.totalorder %s24, 0
      %p65 = por %p63, %p64
      %s67 = sadd.s32 %s66, 1
      %p70 = scmp.eq.s32.totalorder %s18, 1
      %p71 = scmp.ne.s32.totalorder %s66, %s68
      %p72 = scmp.eq.s32.totalorder %s18, 0
      %p73 = por %p71, %p72
      %p74 = scmp.ne.s32.totalorder %s66, %s68
      %p75 = scmp.eq.s32.totalorder %s23, 1
      %p76 = por %p74, %p75
      %p77 = scmp.ne.s32.totalorder %s68, %s69
      %p78 = scmp.eq.s32.totalorder %s23, 0
      %p79 = por %p77, %p78
      %p80 = scmp.ne.s32.totalorder %s68, %s69
      %p81 = scmp.eq.s32.totalorder %s24, 1
      %p82 = por %p80, %p81
      %p84 = scmp.ne.s32.totalorder %s69, %s83
      %p85 = scmp.eq.s32.totalorder %s24, 0
      %p86 = por %p84, %p85
      %s88 = sadd.s32 %s87, 1
      %p91 = scmp.eq.s32.totalorder %s18, 1
      %p92 = scmp.ne.s32.totalorder %s87, %s89
      %p93 = scmp.eq.s32.totalorder %s18, 0
      %p94 = por %p92, %p93
      %p95 = scmp.ne.s32.totalorder %s87, %s89
      %p96 = scmp.eq.s32.totalorder %s23, 1
      %p97 = por %p95, %p96
      %p98 = scmp.ne.s32.totalorder %s89, %s90
      %p99 = scmp.eq.s32.totalorder %s23, 0
      %p100 = por %p98, %p99
      %p101 = scmp.ne.s32.totalorder %s89, %s90
      %p102 = scmp.eq.s32.totalorder %s24, 1
      %p103 = por %p101, %p102
      %p105 = scmp.ne.s32.totalorder %s90, %s104
      %p106 = scmp.eq.s32.totalorder %s24, 0
      %p107 = por %p105, %p106
      %s109 = sadd.s32 %s108, 1
      %p112 = scmp.eq.s32.totalorder %s18, 1
      %p113 = scmp.ne.s32.totalorder %s108, %s110
      %p114 = scmp.eq.s32.totalorder %s18, 0
      %p115 = por %p113, %p114
      %p116 = scmp.ne.s32.totalorder %s108, %s110
      %p117 = scmp.eq.s32.totalorder %s23, 1
      %p118 = por %p116, %p117
      %p119 = scmp.ne.s32.totalorder %s110, %s111
      %p120 = scmp.eq.s32.totalorder %s23, 0
      %p121 = por %p119, %p120
      %p122 = scmp.ne.s32.totalorder %s110, %s111
      %p123 = scmp.eq.s32.totalorder %s24, 1
      %p124 = por %p122, %p123
      %p126 = scmp.ne.s32.totalorder %s111, %s125
      %p127 = scmp.eq.s32.totalorder %s24, 0
      %p128 = por %p126, %p127
      %s130 = sadd.s32 %s129, 1
      %p133 = scmp.eq.s32.totalorder %s18, 1
      %p134 = scmp.ne.s32.totalorder %s129, %s131
      %p135 = scmp.eq.s32.totalorder %s18, 0
      %p136 = por %p134, %p135
      %p137 = scmp.ne.s32.totalorder %s129, %s131
      %p138 = scmp.eq.s32.totalorder %s23, 1
      %p139 = por %p137, %p138
      %p140 = scmp.ne.s32.totalorder %s131, %s132
      %p141 = scmp.eq.s32.totalorder %s23, 0
      %p142 = por %p140, %p141
      %p143 = scmp.ne.s32.totalorder %s131, %s132
      %p144 = scmp.eq.s32.totalorder %s24, 1
      %p145 = por %p143, %p144
      %p147 = scmp.ne.s32.totalorder %s132, %s146
      %p148 = scmp.eq.s32.totalorder %s24, 0
      %p149 = por %p147, %p148
      %s151 = sadd.s32 %s150, 1
      %p154 = scmp.eq.s32.totalorder %s18, 1
      %p155 = scmp.ne.s32.totalorder %s150, %s152
      %p156 = scmp.eq.s32.totalorder %s18, 0
      %p157 = por %p155, %p156
      %p158 = scmp.ne.s32.totalorder %s150, %s152
      %p159 = scmp.eq.s32.totalorder %s23, 1
      %p160 = por %p158, %p159
      %p161 = scmp.ne.s32.totalorder %s152, %s153
      %p162 = scmp.eq.s32.totalorder %s23, 0
      %p163 = por %p161, %p162
      %p164 = scmp.ne.s32.totalorder %s152, %s153
      %p165 = scmp.eq.s32.totalorder %s24, 1
      %p166 = por %p164, %p165
      %p168 = scmp.ne.s32.totalorder %s153, %s167
      %p169 = scmp.eq.s32.totalorder %s24, 0
      %p170 = por %p168, %p169
      %s172 = sadd.s32 %s171, 1
      %p175 = scmp.eq.s32.totalorder %s18, 1
      %p176 = scmp.ne.s32.totalorder %s171, %s173
      %p177 = scmp.eq.s32.totalorder %s18, 0
      %p178 = por %p176, %p177
      %p179 = scmp.ne.s32.totalorder %s171, %s173
      %p180 = scmp.eq.s32.totalorder %s23, 1
      %p181 = por %p179, %p180
      %p182 = scmp.ne.s32.totalorder %s173, %s174
      %p183 = scmp.eq.s32.totalorder %s23, 0
      %p184 = por %p182, %p183
      %p185 = scmp.ne.s32.totalorder %s173, %s174
      %p186 = scmp.eq.s32.totalorder %s24, 1
      %p187 = por %p185, %p186
      %p189 = scmp.ne.s32.totalorder %s174, %s188
      %p190 = scmp.eq.s32.totalorder %s24, 0
      %p191 = por %p189, %p190
      %s192 = ssub.s32 %s25, %s37
      %s193 = ssub.s32 %s26, %s33
      %s194 = sor.u32 %s192, %s193
      %p195 = scmp.eq.s32.totalorder %s194, 0
      %s197 = sadd.s32 %s196, 1
      %s198 = scalar_select %p195, %s196, %s197
      %p201 = pneg %p195
      %p202 = scmp.eq.s32.totalorder %s18, 1
      %p203 = por %p201, %p202
      %p204 = scmp.ne.s32.totalorder %s196, %s199
      %p205 = scmp.eq.s32.totalorder %s18, 0
      %p206 = por %p204, %p205
      %p207 = scmp.ne.s32.totalorder %s196, %s199
      %p208 = scmp.eq.s32.totalorder %s23, 1
      %p209 = por %p207, %p208
      %p210 = scmp.ne.s32.totalorder %s199, %s200
      %p211 = scmp.eq.s32.totalorder %s23, 0
      %p212 = por %p210, %p211
      %p213 = scmp.ne.s32.totalorder %s199, %s200
      %p214 = scmp.eq.s32.totalorder %s24, 1
      %p215 = por %p213, %p214
      %p217 = scmp.ne.s32.totalorder %s200, %s216
      %p218 = scmp.eq.s32.totalorder %s24, 0
      %p219 = por %p217, %p218
      %s220 = ssub.s32 %s25, %s37
      %s221 = ssub.s32 %s26, %s33
      %s222 = sor.u32 %s220, %s221
      %p223 = scmp.eq.s32.totalorder %s222, 0
      %s225 = sadd.s32 %s224, 1
      %s226 = scalar_select %p223, %s224, %s225
      %p229 = pneg %p223
      %p230 = scmp.eq.s32.totalorder %s18, 1
      %p231 = por %p229, %p230
      %p232 = scmp.ne.s32.totalorder %s224, %s227
      %p233 = scmp.eq.s32.totalorder %s18, 0
      %p234 = por %p232, %p233
      %p235 = scmp.ne.s32.totalorder %s224, %s227
      %p236 = scmp.eq.s32.totalorder %s23, 1
      %p237 = por %p235, %p236
      %p238 = scmp.ne.s32.totalorder %s227, %s228
      %p239 = scmp.eq.s32.totalorder %s23, 0
      %p240 = por %p238, %p239
      %p241 = scmp.ne.s32.totalorder %s227, %s228
      %p242 = scmp.eq.s32.totalorder %s24, 1
      %p243 = por %p241, %p242
      %p245 = scmp.ne.s32.totalorder %s228, %s244
      %p246 = scmp.eq.s32.totalorder %s24, 0
      %p247 = por %p245, %p246
      %p248 = scmp.le.s32.totalorder 1, %s18
      %p249 = scmp.lt.s32.totalorder %s18, 3
      %p250 = pnand %p248, %p249
      %p251 = pneg %p250
      // Predicated region
      $region9: #{vote_layer_forward.1} parent=5 // pred_check
        _
      $region10: #{vote_layer_forward.1} parent=5 // pred_check_branch
        %253 = sbr.rel (%p250) target = $region12
      $region11: #{vote_layer_forward.1} parent=5 // pred_region
        %s254 = ssub.s32 %s18, 1
        // Predicated region
        $region13: #{vote_layer_forward.1} parent=11 // pred_check
          %p255 = pneg %p79
        $region14: #{vote_layer_forward.1} parent=11 // pred_check_branch
          %257 = sbr.rel (%p255) target = $region16
        $region15: #{vote_layer_forward.1} parent=11 // pred_region
          _
        $region16: #{vote_layer_forward.1} parent=11 // pred_fallthru
          _
        // Predicated region
        $region17: #{vote_layer_forward.1} parent=11 // pred_check
          %p258 = pneg %p100
        $region18: #{vote_layer_forward.1} parent=11 // pred_check_branch
          %260 = sbr.rel (%p258) target = $region20
        $region19: #{vote_layer_forward.1} parent=11 // pred_region
          _
        $region20: #{vote_layer_forward.1} parent=11 // pred_fallthru
          _
        // Predicated region
        $region21: #{vote_layer_forward.1} parent=11 // pred_check
          %p261 = pneg %p121
        $region22: #{vote_layer_forward.1} parent=11 // pred_check_branch
          %263 = sbr.rel (%p261) target = $region24
        $region23: #{vote_layer_forward.1} parent=11 // pred_region
          _
        $region24: #{vote_layer_forward.1} parent=11 // pred_fallthru
          _
        // Predicated region
        $region25: #{vote_layer_forward.1} parent=11 // pred_check
          %p264 = pneg %p142
        $region26: #{vote_layer_forward.1} parent=11 // pred_check_branch
          %266 = sbr.rel (%p264) target = $region28
        $region27: #{vote_layer_forward.1} parent=11 // pred_region
          _
        $region28: #{vote_layer_forward.1} parent=11 // pred_fallthru
          _
        // Predicated region
        $region29: #{vote_layer_forward.1} parent=11 // pred_check
          %p267 = pneg %p163
        $region30: #{vote_layer_forward.1} parent=11 // pred_check_branch
          %269 = sbr.rel (%p267) target = $region32
        $region31: #{vote_layer_forward.1} parent=11 // pred_region
          _
        $region32: #{vote_layer_forward.1} parent=11 // pred_fallthru
          _
        // Predicated region
        $region33: #{vote_layer_forward.1} parent=11 // pred_check
          %p270 = pneg %p184
        $region34: #{vote_layer_forward.1} parent=11 // pred_check_branch
          %272 = sbr.rel (%p270) target = $region36
        $region35: #{vote_layer_forward.1} parent=11 // pred_region
          _
        $region36: #{vote_layer_forward.1} parent=11 // pred_fallthru
          _
      $region12: #{vote_layer_forward.1} parent=5 // pred_fallthru
        _
      %p273 = scmp.lt.s32.totalorder %s18, 2
      // Predicated region
      $region37: #{vote_layer_forward.1} parent=5 // pred_check
        %p274 = pneg %p273
      $region38: #{vote_layer_forward.1} parent=5 // pred_check_branch
        %276 = sbr.rel (%p274) target = $region40
      $region39: #{vote_layer_forward.1} parent=5 // pred_region
        // Predicated region
        $region41: #{vote_layer_forward.1} parent=39 // pred_check
          %p277 = pneg %p52
        $region42: #{vote_layer_forward.1} parent=39 // pred_check_branch
          %279 = sbr.rel (%p277) target = $region44
        $region43: #{vote_layer_forward.1} parent=39 // pred_region
          %s280 = smul.u32 8, %s26
          %p281 = scmp.lt.s32.totalorder %s25, 1
          %s282 = scalar_select %p281, %s25, 1
          %p283 = scmp.lt.s32.totalorder %s280, 7
          %s284 = scalar_select %p283, %s280, 7
          %s285 = smul.addr %s282, 32
          %s286 = sadd.s32 %s284, %s285
          %s287 = smul.addr %s286, 4
          %s288 = scalar_lea.vmem %s0, %s287
          %s289 = smul.u32 8, %s26
        $region44: #{vote_layer_forward.1} parent=39 // pred_fallthru
          _
      $region40: #{vote_layer_forward.1} parent=5 // pred_fallthru
        _
      %p290 = scmp.le.s32.totalorder 1, %s18
      %p291 = scmp.lt.s32.totalorder %s18, 3
      %p292 = pnand %p290, %p291
      %p293 = pneg %p292
      // Predicated region
      $region45: #{vote_layer_forward.1} parent=5 // pred_check
        _
      $region46: #{vote_layer_forward.1} parent=5 // pred_check_branch
        %295 = sbr.rel (%p292) target = $region48
      $region47: #{vote_layer_forward.1} parent=5 // pred_region
        %s296 = ssub.s32 %s18, 1
        %s297 = smul.u32 8, %s28
        %p298 = scmp.lt.s32.totalorder %s27, 1
        %s299 = scalar_select %p298, %s27, 1
        %p300 = scmp.lt.s32.totalorder %s297, 7
        %s301 = scalar_select %p300, %s297, 7
        %s302 = smul.addr %s299, 32
        %s303 = sadd.s32 %s301, %s302
        %s304 = smul.addr %s303, 4
        %s305 = scalar_lea.vmem %s0, %s304
        %p306 = pneg %p58
        %p307 = pneg %p55
        %p308 = pneg %p79
        %p309 = pneg %p76
        %p310 = pneg %p100
        %p311 = pneg %p97
        %p312 = pneg %p121
        %p313 = pneg %p118
        %p314 = pneg %p142
        %p315 = pneg %p139
        %p316 = pneg %p163
        %p317 = pneg %p160
        %p318 = pneg %p184
        %p319 = pneg %p181
        %p320 = pneg %p212
        %p321 = pneg %p209
        %s322 = sand.u32 %s199, 1
        %s323 = scalar_lea.sflag [#allocation3], %s322
        %s324 = sand.u32 %s199, 1
        %s325 = smul.addr %s324, 256
        %s326 = scalar_lea.vmem [#allocation2], %s325
        %p327 = pneg %p240
        %p328 = pneg %p237
        %s329 = smul.u32 8, %s28
        %p330 = scmp.lt.s32.totalorder %s27, 1
        %s331 = scalar_select %p330, %s27, 1
        %p332 = scmp.lt.s32.totalorder %s329, 7
        %s333 = scalar_select %p332, %s329, 7
        %s334 = smul.addr %s331, 8
        %s335 = sadd.s32 %s333, %s334
        %s336 = smul.addr %s335, 8
        %s337 = scalar_lea.vmem %s8, %s336
        %s338 = smul.u32 8, %s28
        %p339 = scmp.lt.s32.totalorder %s27, 1
        %s340 = scalar_select %p339, %s27, 1
        %p341 = scmp.lt.s32.totalorder %s338, 7
        %s342 = scalar_select %p341, %s338, 7
        %s343 = smul.addr %s340, 32
        %s344 = sadd.s32 %s342, %s343
        %s345 = smul.addr %s344, 4
        %s346 = scalar_lea.vmem %s0, %s345
        %s347 = smul.u32 8, %s28
        %s348 = smul.u32 8, %s28
        %s349 = smul.u32 8, %s28
        %p350 = scmp.lt.s32.totalorder %s27, 1
        %s351 = scalar_select %p350, %s27, 1
        %p352 = scmp.lt.s32.totalorder %s349, 7
        %s353 = scalar_select %p352, %s349, 7
        %s354 = smul.addr %s351, 8
        %s355 = sadd.s32 %s353, %s354
        %s356 = smul.addr %s355, 8
        %s357 = scalar_lea.vmem %s8, %s356
        %s358 = smul.u32 8, %s28
        %v360 = vld [vmem:[%s346] sm:$0xff]
        %v361 = vld [vmem:[%s346 + $0x8] sm:$0xff]
        %v362 = vld [vmem:[%s346 + $0x10] sm:$0xff]
        %v363 = vld [vmem:[%s346 + $0x18] sm:$0xff]
        %v364 = vld [vmem:[%s346 + $0x20] sm:$0xff]
        %v365 = vld [vmem:[%s346 + $0x28] sm:$0xff]
        %v366 = vld [vmem:[%s346 + $0x30] sm:$0xff]
        %v367 = vld [vmem:[%s346 + $0x38] sm:$0xff]
        %v368 = vld [vmem:[%s346 + $0x40] sm:$0xff]
        %v369 = vld [vmem:[%s346 + $0x48] sm:$0xff]
        %v370 = vld [vmem:[%s346 + $0x50] sm:$0xff]
        %v371 = vld [vmem:[%s346 + $0x58] sm:$0xff]
        %v372 = vld [vmem:[%s346 + $0x60] sm:$0xff]
        %v373 = vld [vmem:[%s346 + $0x68] sm:$0xff]
        %v374 = vld [vmem:[%s346 + $0x70] sm:$0xff]
        %v375 = vld [vmem:[%s346 + $0x78] sm:$0xff]
        %v376 = vld [vmem:[%s1] sm:$0xf]
        %v377 = vld [vmem:[%s1 + $0x4] sm:$0xf]
        %v378 = vld [vmem:[%s1 + $0x8] sm:$0xf]
        %v379 = vld [vmem:[%s1 + $0xc] sm:$0xf]
        %v380 = vld [vmem:[%s1 + $0x10] sm:$0xf]
        %v381 = vld [vmem:[%s1 + $0x14] sm:$0xf]
        %v382 = vld [vmem:[%s1 + $0x18] sm:$0xf]
        %v383 = vld [vmem:[%s1 + $0x1c] sm:$0xf]
        %v384 = vld [vmem:[%s2] sm:$0xff]
        %v385 = vld [vmem:[%s2 + $0x8] sm:$0xff]
        %v386 = vld [vmem:[%s2 + $0x10] sm:$0xff]
        %v387 = vld [vmem:[%s2 + $0x18] sm:$0xff]
        %v388 = vld [vmem:[%s2 + $0x20] sm:$0xff]
        %v389 = vld [vmem:[%s2 + $0x28] sm:$0xff]
        %v390 = vld [vmem:[%s2 + $0x30] sm:$0xff]
        %v391 = vld [vmem:[%s2 + $0x38] sm:$0xff]
        %393 = vset.pattern.permute.xlu0 0
        %394 = vperm.xlu0 %393, %v384
        %v395 = vpop.permute.xlu0 %394
        %398 = vset.pattern.permute.xlu0 0
        %399 = vperm.xlu0 %398, %v385
        %v400 = vpop.permute.xlu0 %399
        %403 = vset.pattern.permute.xlu0 0
        %404 = vperm.xlu0 %403, %v386
        %v405 = vpop.permute.xlu0 %404
        %408 = vset.pattern.permute.xlu0 0
        %409 = vperm.xlu0 %408, %v387
        %v410 = vpop.permute.xlu0 %409
        %413 = vset.pattern.permute.xlu0 0
        %414 = vperm.xlu0 %413, %v388
        %v415 = vpop.permute.xlu0 %414
        %418 = vset.pattern.permute.xlu0 0
        %419 = vperm.xlu0 %418, %v389
        %v420 = vpop.permute.xlu0 %419
        %423 = vset.pattern.permute.xlu0 0
        %424 = vperm.xlu0 %423, %v390
        %v425 = vpop.permute.xlu0 %424
        %428 = vset.pattern.permute.xlu0 0
        %429 = vperm.xlu0 %428, %v391
        %v430 = vpop.permute.xlu0 %429
        %v440 = vunpack.c.l.b16 %v376
        %v441 = vunpack.c.l.b16 %v377
        %v442 = vunpack.c.l.b16 %v378
        %v443 = vunpack.c.l.b16 %v379
        %v444 = vunpack.c.l.b16 %v380
        %v445 = vunpack.c.l.b16 %v381
        %v446 = vunpack.c.l.b16 %v382
        %v447 = vunpack.c.l.b16 %v383
        %v448 = vpack.c.b16 %v441, %v440
        %v449 = vpack.c.b16 %v443, %v442
        %v450 = vpack.c.b16 %v445, %v444
        %v451 = vpack.c.b16 %v447, %v446
        %v468 = vunpack.c.l.b16 %v360
        %v469 = vunpack.c.h.b16 %v360
        %v470 = vunpack.c.l.b16 %v361
        %v471 = vunpack.c.h.b16 %v361
        %v472 = vunpack.c.l.b16 %v362
        %v473 = vunpack.c.h.b16 %v362
        %v474 = vunpack.c.l.b16 %v363
        %v475 = vunpack.c.h.b16 %v363
        %v476 = vunpack.c.l.b16 %v364
        %v477 = vunpack.c.h.b16 %v364
        %v478 = vunpack.c.l.b16 %v365
        %v479 = vunpack.c.h.b16 %v365
        %v480 = vunpack.c.l.b16 %v366
        %v481 = vunpack.c.h.b16 %v366
        %v482 = vunpack.c.l.b16 %v367
        %v483 = vunpack.c.h.b16 %v367
        %v484 = vunpack.c.l.b16 %v368
        %v485 = vunpack.c.h.b16 %v368
        %v486 = vunpack.c.l.b16 %v369
        %v487 = vunpack.c.h.b16 %v369
        %v488 = vunpack.c.l.b16 %v370
        %v489 = vunpack.c.h.b16 %v370
        %v490 = vunpack.c.l.b16 %v371
        %v491 = vunpack.c.h.b16 %v371
        %v492 = vunpack.c.l.b16 %v372
        %v493 = vunpack.c.h.b16 %v372
        %v494 = vunpack.c.l.b16 %v373
        %v495 = vunpack.c.h.b16 %v373
        %v496 = vunpack.c.l.b16 %v374
        %v497 = vunpack.c.h.b16 %v374
        %v498 = vunpack.c.l.b16 %v375
        %v499 = vunpack.c.h.b16 %v375
        %v500 = vpack.c.b16 %v476, %v468
        %v501 = vpack.c.b16 %v477, %v469
        %v502 = vpack.c.b16 %v478, %v470
        %v503 = vpack.c.b16 %v479, %v471
        %v504 = vpack.c.b16 %v480, %v472
        %v505 = vpack.c.b16 %v481, %v473
        %v506 = vpack.c.b16 %v482, %v474
        %v507 = vpack.c.b16 %v483, %v475
        %v508 = vpack.c.b16 %v492, %v484
        %v509 = vpack.c.b16 %v493, %v485
        %v510 = vpack.c.b16 %v494, %v486
        %v511 = vpack.c.b16 %v495, %v487
        %v512 = vpack.c.b16 %v496, %v488
        %v513 = vpack.c.b16 %v497, %v489
        %v514 = vpack.c.b16 %v498, %v490
        %v515 = vpack.c.b16 %v499, %v491
        %vm532 = vcmask 261120
        %v534 = vsel %vm532, %v448, 0
        %v537 = vsel %vm532, %v449, 0
        %v540 = vsel %vm532, %v450, 0
        %v543 = vsel %vm532, %v451, 0
        %545 = vmatprep.subr.bf16.mxu0 %v501
        %546 = vmatpush1.bf16.msra.mxu0 %v500
        %547 = vmatprep.subr.bf16.mxu0 %v509
        %548 = vmatpush1.bf16.msra.mxu0 %v508
        %549 = vmatprep.subr.bf16.mxu0 0
        %550 = vmatpush1.bf16.msra.mxu0 0
        %551 = vmatprep.subr.bf16.mxu0 0
        %552 = vmatpush1.bf16.msra.mxu0 0
        %553 = vmatprep.subr.bf16.mxu0 0
        %554 = vmatpush1.bf16.msra.mxu0 0
        %555 = vmatprep.subr.bf16.mxu0 0
        %556 = vmatpush1.bf16.msra.mxu0 0
        %557 = vmatprep.subr.bf16.mxu0 0
        %558 = vmatpush1.bf16.msra.mxu0 0
        %559 = vmatprep.subr.bf16.mxu0 0
        %560 = vmatpush1.bf16.msra.mxu0 0
        %561 = vmatprep.subr.bf16.mxu0 0
        %562 = vmatpush1.bf16.msra.mxu0 0
        %563 = vmatprep.subr.bf16.mxu0 0
        %564 = vmatpush1.bf16.msra.mxu0 0
        %565 = vmatprep.subr.bf16.mxu0 0
        %566 = vmatpush1.bf16.msra.mxu0 0
        %567 = vmatprep.subr.bf16.mxu0 0
        %568 = vmatpush1.bf16.msra.mxu0 0
        %569 = vmatprep.subr.bf16.mxu0 0
        %570 = vmatpush1.bf16.msra.mxu0 0
        %571 = vmatprep.subr.bf16.mxu0 0
        %572 = vmatpush1.bf16.msra.mxu0 0
        %573 = vmatprep.subr.bf16.mxu0 0
        %574 = vmatpush1.bf16.msra.mxu0 0
        %575 = vmatprep.subr.bf16.mxu0 0
        %576 = vmatpush1.bf16.msra.mxu0 0
        %577 = vmatprep.mubr.bf16.mxu0 0
        %578 = vmatmul.mubr.bf16.gmra.mrb[0].mxu0 %v534
        %v579 = vpop.f32.mrb[0].mxu0
        %v580 = vadd.f32 %v395, %v579
        %v581 = vpop.f32.mrb[0].mxu0
        %v582 = vadd.f32 %v395, %v581
        %v583 = vpop.f32.mrb[0].mxu0
        %v584 = vadd.f32 %v400, %v583
        %v585 = vpop.f32.mrb[0].mxu0
        %v586 = vadd.f32 %v400, %v585
        %587 = vmatprep.mubr.bf16.mxu0 0
        %588 = vmatmul.mubr.bf16.gmra.mrb[0].mxu0 %v537
        %v589 = vpop.f32.mrb[0].mxu0
        %v590 = vadd.f32 %v405, %v589
        %v591 = vpop.f32.mrb[0].mxu0
        %v592 = vadd.f32 %v405, %v591
        %v593 = vpop.f32.mrb[0].mxu0
        %v594 = vadd.f32 %v410, %v593
        %v595 = vpop.f32.mrb[0].mxu0
        %v596 = vadd.f32 %v410, %v595
        %597 = vmatprep.mubr.bf16.mxu0 0
        %598 = vmatmul.mubr.bf16.gmra.mrb[0].mxu0 %v540
        %v599 = vpop.f32.mrb[0].mxu0
        %v600 = vadd.f32 %v415, %v599
        %v601 = vpop.f32.mrb[0].mxu0
        %v602 = vadd.f32 %v415, %v601
        %v603 = vpop.f32.mrb[0].mxu0
        %v604 = vadd.f32 %v420, %v603
        %v605 = vpop.f32.mrb[0].mxu0
        %v606 = vadd.f32 %v420, %v605
        %607 = vmatprep.mubr.bf16.mxu0 0
        %608 = vmatmul.mubr.bf16.gmra.mrb[0].mxu0 %v543
        %v609 = vpop.f32.mrb[0].mxu0
        %v610 = vadd.f32 %v425, %v609
        %v611 = vpop.f32.mrb[0].mxu0
        %v612 = vadd.f32 %v425, %v611
        %v613 = vpop.f32.mrb[0].mxu0
        %v614 = vadd.f32 %v430, %v613
        %v615 = vpop.f32.mrb[0].mxu0
        %v616 = vadd.f32 %v430, %v615
        %617 = vdwg.mxu0
        %618 = vmatprep.subr.bf16.mxu0 %v503
        %619 = vmatpush1.bf16.msra.mxu0 %v502
        %620 = vmatprep.subr.bf16.mxu0 %v511
        %621 = vmatpush1.bf16.msra.mxu0 %v510
        %622 = vmatprep.subr.bf16.mxu0 0
        %623 = vmatpush1.bf16.msra.mxu0 0
        %624 = vmatprep.subr.bf16.mxu0 0
        %625 = vmatpush1.bf16.msra.mxu0 0
        %626 = vmatprep.subr.bf16.mxu0 0
        %627 = vmatpush1.bf16.msra.mxu0 0
        %628 = vmatprep.subr.bf16.mxu0 0
        %629 = vmatpush1.bf16.msra.mxu0 0
        %630 = vmatprep.subr.bf16.mxu0 0
        %631 = vmatpush1.bf16.msra.mxu0 0
        %632 = vmatprep.subr.bf16.mxu0 0
        %633 = vmatpush1.bf16.msra.mxu0 0
        %634 = vmatprep.subr.bf16.mxu0 0
        %635 = vmatpush1.bf16.msra.mxu0 0
        %636 = vmatprep.subr.bf16.mxu0 0
        %637 = vmatpush1.bf16.msra.mxu0 0
        %638 = vmatprep.subr.bf16.mxu0 0
        %639 = vmatpush1.bf16.msra.mxu0 0
        %640 = vmatprep.subr.bf16.mxu0 0
        %641 = vmatpush1.bf16.msra.mxu0 0
        %642 = vmatprep.subr.bf16.mxu0 0
        %643 = vmatpush1.bf16.msra.mxu0 0
        %644 = vmatprep.subr.bf16.mxu0 0
        %645 = vmatpush1.bf16.msra.mxu0 0
        %646 = vmatprep.subr.bf16.mxu0 0
        %647 = vmatpush1.bf16.msra.mxu0 0
        %648 = vmatprep.subr.bf16.mxu0 0
        %649 = vmatpush1.bf16.msra.mxu0 0
        %650 = vmatprep.mubr.bf16.mxu0 0
        %651 = vmatmul.mubr.bf16.gmra.mrb[0].mxu0 %v534
        %v652 = vpop.f32.mrb[0].mxu0
        %v653 = vadd.f32 %v395, %v652
        %v654 = vpop.f32.mrb[0].mxu0
        %v655 = vadd.f32 %v395, %v654
        %v656 = vpop.f32.mrb[0].mxu0
        %v657 = vadd.f32 %v400, %v656
        %v658 = vpop.f32.mrb[0].mxu0
        %v659 = vadd.f32 %v400, %v658
        %660 = vmatprep.mubr.bf16.mxu0 0
        %661 = vmatmul.mubr.bf16.gmra.mrb[0].mxu0 %v537
        %v662 = vpop.f32.mrb[0].mxu0
        %v663 = vadd.f32 %v405, %v662
        %v664 = vpop.f32.mrb[0].mxu0
        %v665 = vadd.f32 %v405, %v664
        %v666 = vpop.f32.mrb[0].mxu0
        %v667 = vadd.f32 %v410, %v666
        %v668 = vpop.f32.mrb[0].mxu0
        %v669 = vadd.f32 %v410, %v668
        %670 = vmatprep.mubr.bf16.mxu0 0
        %671 = vmatmul.mubr.bf16.gmra.mrb[0].mxu0 %v540
        %v672 = vpop.f32.mrb[0].mxu0
        %v673 = vadd.f32 %v415, %v672
        %v674 = vpop.f32.mrb[0].mxu0
        %v675 = vadd.f32 %v415, %v674
        %v676 = vpop.f32.mrb[0].mxu0
        %v677 = vadd.f32 %v420, %v676
        %v678 = vpop.f32.mrb[0].mxu0
        %v679 = vadd.f32 %v420, %v678
        %680 = vmatprep.mubr.bf16.mxu0 0
        %681 = vmatmul.mubr.bf16.gmra.mrb[0].mxu0 %v543
        %v682 = vpop.f32.mrb[0].mxu0
        %v683 = vadd.f32 %v425, %v682
        %v684 = vpop.f32.mrb[0].mxu0
        %v685 = vadd.f32 %v425, %v684
        %v686 = vpop.f32.mrb[0].mxu0
        %v687 = vadd.f32 %v430, %v686
        %v688 = vpop.f32.mrb[0].mxu0
        %v689 = vadd.f32 %v430, %v688
        %690 = vdwg.mxu0
        %691 = vmatprep.subr.bf16.mxu0 %v505
        %692 = vmatpush1.bf16.msra.mxu0 %v504
        %693 = vmatprep.subr.bf16.mxu0 %v513
        %694 = vmatpush1.bf16.msra.mxu0 %v512
        %695 = vmatprep.subr.bf16.mxu0 0
        %696 = vmatpush1.bf16.msra.mxu0 0
        %697 = vmatprep.subr.bf16.mxu0 0
        %698 = vmatpush1.bf16.msra.mxu0 0
        %699 = vmatprep.subr.bf16.mxu0 0
        %700 = vmatpush1.bf16.msra.mxu0 0
        %701 = vmatprep.subr.bf16.mxu0 0
        %702 = vmatpush1.bf16.msra.mxu0 0
        %703 = vmatprep.subr.bf16.mxu0 0
        %704 = vmatpush1.bf16.msra.mxu0 0
        %705 = vmatprep.subr.bf16.mxu0 0
        %706 = vmatpush1.bf16.msra.mxu0 0
        %707 = vmatprep.subr.bf16.mxu0 0
        %708 = vmatpush1.bf16.msra.mxu0 0
        %709 = vmatprep.subr.bf16.mxu0 0
        %710 = vmatpush1.bf16.msra.mxu0 0
        %711 = vmatprep.subr.bf16.mxu0 0
        %712 = vmatpush1.bf16.msra.mxu0 0
        %713 = vmatprep.subr.bf16.mxu0 0
        %714 = vmatpush1.bf16.msra.mxu0 0
        %715 = vmatprep.subr.bf16.mxu0 0
        %716 = vmatpush1.bf16.msra.mxu0 0
        %717 = vmatprep.subr.bf16.mxu0 0
        %718 = vmatpush1.bf16.msra.mxu0 0
        %719 = vmatprep.subr.bf16.mxu0 0
        %720 = vmatpush1.bf16.msra.mxu0 0
        %721 = vmatprep.subr.bf16.mxu0 0
        %722 = vmatpush1.bf16.msra.mxu0 0
        %723 = vmatprep.mubr.bf16.mxu0 0
        %724 = vmatmul.mubr.bf16.gmra.mrb[0].mxu0 %v534
        %v725 = vpop.f32.mrb[0].mxu0
        %v726 = vadd.f32 %v395, %v725
        %v727 = vpop.f32.mrb[0].mxu0
        %v728 = vadd.f32 %v395, %v727
        %v729 = vpop.f32.mrb[0].mxu0
        %v730 = vadd.f32 %v400, %v729
        %v731 = vpop.f32.mrb[0].mxu0
        %v732 = vadd.f32 %v400, %v731
        %733 = vmatprep.mubr.bf16.mxu0 0
        %734 = vmatmul.mubr.bf16.gmra.mrb[0].mxu0 %v537
        %v735 = vpop.f32.mrb[0].mxu0
        %v736 = vadd.f32 %v405, %v735
        %v737 = vpop.f32.mrb[0].mxu0
        %v738 = vadd.f32 %v405, %v737
        %v739 = vpop.f32.mrb[0].mxu0
        %v740 = vadd.f32 %v410, %v739
        %v741 = vpop.f32.mrb[0].mxu0
        %v742 = vadd.f32 %v410, %v741
        %743 = vmatprep.mubr.bf16.mxu0 0
        %744 = vmatmul.mubr.bf16.gmra.mrb[0].mxu0 %v540
        %v745 = vpop.f32.mrb[0].mxu0
        %v746 = vadd.f32 %v415, %v745
        %v747 = vpop.f32.mrb[0].mxu0
        %v748 = vadd.f32 %v415, %v747
        %v749 = vpop.f32.mrb[0].mxu0
        %v750 = vadd.f32 %v420, %v749
        %v751 = vpop.f32.mrb[0].mxu0
        %v752 = vadd.f32 %v420, %v751
        %753 = vmatprep.mubr.bf16.mxu0 0
        %754 = vmatmul.mubr.bf16.gmra.mrb[0].mxu0 %v543
        %v755 = vpop.f32.mrb[0].mxu0
        %v756 = vadd.f32 %v425, %v755
        %v757 = vpop.f32.mrb[0].mxu0
        %v758 = vadd.f32 %v425, %v757
        %v759 = vpop.f32.mrb[0].mxu0
        %v760 = vadd.f32 %v430, %v759
        %v761 = vpop.f32.mrb[0].mxu0
        %v762 = vadd.f32 %v430, %v761
        %763 = vdwg.mxu0
        %764 = vmatprep.subr.bf16.mxu0 %v507
        %765 = vmatpush1.bf16.msra.mxu0 %v506
        %766 = vmatprep.subr.bf16.mxu0 %v515
        %767 = vmatpush1.bf16.msra.mxu0 %v514
        %768 = vmatprep.subr.bf16.mxu0 0
        %769 = vmatpush1.bf16.msra.mxu0 0
        %770 = vmatprep.subr.bf16.mxu0 0
        %771 = vmatpush1.bf16.msra.mxu0 0
        %772 = vmatprep.subr.bf16.mxu0 0
        %773 = vmatpush1.bf16.msra.mxu0 0
        %774 = vmatprep.subr.bf16.mxu0 0
        %775 = vmatpush1.bf16.msra.mxu0 0
        %776 = vmatprep.subr.bf16.mxu0 0
        %777 = vmatpush1.bf16.msra.mxu0 0
        %778 = vmatprep.subr.bf16.mxu0 0
        %779 = vmatpush1.bf16.msra.mxu0 0
        %780 = vmatprep.subr.bf16.mxu0 0
        %781 = vmatpush1.bf16.msra.mxu0 0
        %782 = vmatprep.subr.bf16.mxu0 0
        %783 = vmatpush1.bf16.msra.mxu0 0
        %784 = vmatprep.subr.bf16.mxu0 0
        %785 = vmatpush1.bf16.msra.mxu0 0
        %786 = vmatprep.subr.bf16.mxu0 0
        %787 = vmatpush1.bf16.msra.mxu0 0
        %788 = vmatprep.subr.bf16.mxu0 0
        %789 = vmatpush1.bf16.msra.mxu0 0
        %790 = vmatprep.subr.bf16.mxu0 0
        %791 = vmatpush1.bf16.msra.mxu0 0
        %792 = vmatprep.subr.bf16.mxu0 0
        %793 = vmatpush1.bf16.msra.mxu0 0
        %794 = vmatprep.subr.bf16.mxu0 0
        %795 = vmatpush1.bf16.msra.mxu0 0
        %796 = vmatprep.mubr.bf16.mxu0 0
        %797 = vmatmul.mubr.bf16.gmra.mrb[0].mxu0 %v534
        %v798 = vpop.f32.mrb[0].mxu0
        %v799 = vadd.f32 %v395, %v798
        %v800 = vpop.f32.mrb[0].mxu0
        %v801 = vadd.f32 %v395, %v800
        %v802 = vpop.f32.mrb[0].mxu0
        %v803 = vadd.f32 %v400, %v802
        %v804 = vpop.f32.mrb[0].mxu0
        %v805 = vadd.f32 %v400, %v804
        %806 = vmatprep.mubr.bf16.mxu0 0
        %807 = vmatmul.mubr.bf16.gmra.mrb[0].mxu0 %v537
        %v808 = vpop.f32.mrb[0].mxu0
        %v809 = vadd.f32 %v405, %v808
        %v810 = vpop.f32.mrb[0].mxu0
        %v811 = vadd.f32 %v405, %v810
        %v812 = vpop.f32.mrb[0].mxu0
        %v813 = vadd.f32 %v410, %v812
        %v814 = vpop.f32.mrb[0].mxu0
        %v815 = vadd.f32 %v410, %v814
        %816 = vmatprep.mubr.bf16.mxu0 0
        %817 = vmatmul.mubr.bf16.gmra.mrb[0].mxu0 %v540
        %v818 = vpop.f32.mrb[0].mxu0
        %v819 = vadd.f32 %v415, %v818
        %v820 = vpop.f32.mrb[0].mxu0
        %v821 = vadd.f32 %v415, %v820
        %v822 = vpop.f32.mrb[0].mxu0
        %v823 = vadd.f32 %v420, %v822
        %v824 = vpop.f32.mrb[0].mxu0
        %v825 = vadd.f32 %v420, %v824
        %826 = vmatprep.mubr.bf16.mxu0 0
        %827 = vmatmul.mubr.bf16.gmra.mrb[0].mxu0 %v543
        %v828 = vpop.f32.mrb[0].mxu0
        %v829 = vadd.f32 %v425, %v828
        %v830 = vpop.f32.mrb[0].mxu0
        %v831 = vadd.f32 %v425, %v830
        %v832 = vpop.f32.mrb[0].mxu0
        %v833 = vadd.f32 %v430, %v832
        %v834 = vpop.f32.mrb[0].mxu0
        %v835 = vadd.f32 %v430, %v834
        %836 = vdwg.mxu0
        %v837 = vmax.f32 %v580, 0.0
        %v838 = vmax.f32 %v582, 0.0
        %v839 = vmax.f32 %v653, 0.0
        %v840 = vmax.f32 %v655, 0.0
        %v841 = vmax.f32 %v726, 0.0
        %v842 = vmax.f32 %v728, 0.0
        %v843 = vmax.f32 %v799, 0.0
        %v844 = vmax.f32 %v801, 0.0
        %v845 = vmax.f32 %v584, 0.0
        %v846 = vmax.f32 %v586, 0.0
        %v847 = vmax.f32 %v657, 0.0
        %v848 = vmax.f32 %v659, 0.0
        %v849 = vmax.f32 %v730, 0.0
        %v850 = vmax.f32 %v732, 0.0
        %v851 = vmax.f32 %v803, 0.0
        %v852 = vmax.f32 %v805, 0.0
        %v853 = vmax.f32 %v590, 0.0
        %v854 = vmax.f32 %v592, 0.0
        %v855 = vmax.f32 %v663, 0.0
        %v856 = vmax.f32 %v665, 0.0
        %v857 = vmax.f32 %v736, 0.0
        %v858 = vmax.f32 %v738, 0.0
        %v859 = vmax.f32 %v809, 0.0
        %v860 = vmax.f32 %v811, 0.0
        %v861 = vmax.f32 %v594, 0.0
        %v862 = vmax.f32 %v596, 0.0
        %v863 = vmax.f32 %v667, 0.0
        %v864 = vmax.f32 %v669, 0.0
        %v865 = vmax.f32 %v740, 0.0
        %v866 = vmax.f32 %v742, 0.0
        %v867 = vmax.f32 %v813, 0.0
        %v868 = vmax.f32 %v815, 0.0
        %v869 = vmax.f32 %v600, 0.0
        %v870 = vmax.f32 %v602, 0.0
        %v871 = vmax.f32 %v673, 0.0
        %v872 = vmax.f32 %v675, 0.0
        %v873 = vmax.f32 %v746, 0.0
        %v874 = vmax.f32 %v748, 0.0
        %v875 = vmax.f32 %v819, 0.0
        %v876 = vmax.f32 %v821, 0.0
        %v877 = vmax.f32 %v604, 0.0
        %v878 = vmax.f32 %v606, 0.0
        %v879 = vmax.f32 %v677, 0.0
        %v880 = vmax.f32 %v679, 0.0
        %v881 = vmax.f32 %v750, 0.0
        %v882 = vmax.f32 %v752, 0.0
        %v883 = vmax.f32 %v823, 0.0
        %v884 = vmax.f32 %v825, 0.0
        %v885 = vmax.f32 %v610, 0.0
        %v886 = vmax.f32 %v612, 0.0
        %v887 = vmax.f32 %v683, 0.0
        %v888 = vmax.f32 %v685, 0.0
        %v889 = vmax.f32 %v756, 0.0
        %v890 = vmax.f32 %v758, 0.0
        %v891 = vmax.f32 %v829, 0.0
        %v892 = vmax.f32 %v831, 0.0
        %v893 = vmax.f32 %v614, 0.0
        %v894 = vmax.f32 %v616, 0.0
        %v895 = vmax.f32 %v687, 0.0
        %v896 = vmax.f32 %v689, 0.0
        %v897 = vmax.f32 %v760, 0.0
        %v898 = vmax.f32 %v762, 0.0
        %v899 = vmax.f32 %v833, 0.0
        %v900 = vmax.f32 %v835, 0.0
        %v901 = vld [vmem:[%s3] sm:$0xf]
        %v902 = vld [vmem:[%s3 + $0x4] sm:$0xf]
        %v903 = vld [vmem:[%s3 + $0x8] sm:$0xf]
        %v904 = vld [vmem:[%s3 + $0xc] sm:$0xf]
        %v905 = vpack.c.bf16 %v845, %v837
        %v906 = vpack.c.bf16 %v846, %v838
        %v907 = vpack.c.bf16 %v847, %v839
        %v908 = vpack.c.bf16 %v848, %v840
        %v909 = vpack.c.bf16 %v849, %v841
        %v910 = vpack.c.bf16 %v850, %v842
        %v911 = vpack.c.bf16 %v851, %v843
        %v912 = vpack.c.bf16 %v852, %v844
        %v913 = vpack.c.bf16 %v861, %v853
        %v914 = vpack.c.bf16 %v862, %v854
        %v915 = vpack.c.bf16 %v863, %v855
        %v916 = vpack.c.bf16 %v864, %v856
        %v917 = vpack.c.bf16 %v865, %v857
        %v918 = vpack.c.bf16 %v866, %v858
        %v919 = vpack.c.bf16 %v867, %v859
        %v920 = vpack.c.bf16 %v868, %v860
        %v921 = vpack.c.bf16 %v877, %v869
        %v922 = vpack.c.bf16 %v878, %v870
        %v923 = vpack.c.bf16 %v879, %v871
        %v924 = vpack.c.bf16 %v880, %v872
        %v925 = vpack.c.bf16 %v881, %v873
        %v926 = vpack.c.bf16 %v882, %v874
        %v927 = vpack.c.bf16 %v883, %v875
        %v928 = vpack.c.bf16 %v884, %v876
        %v929 = vpack.c.bf16 %v893, %v885
        %v930 = vpack.c.bf16 %v894, %v886
        %v931 = vpack.c.bf16 %v895, %v887
        %v932 = vpack.c.bf16 %v896, %v888
        %v933 = vpack.c.bf16 %v897, %v889
        %v934 = vpack.c.bf16 %v898, %v890
        %v935 = vpack.c.bf16 %v899, %v891
        %v936 = vpack.c.bf16 %v900, %v892
        %v937 = vld [vmem:[%s4] sm:$0xff]
        %v938 = vld [vmem:[%s4 + $0x8] sm:$0xff]
        %v939 = vld [vmem:[%s4 + $0x10] sm:$0xff]
        %v940 = vld [vmem:[%s4 + $0x18] sm:$0xff]
        %942 = vset.pattern.permute.xlu0 0
        %943 = vperm.xlu0 %942, %v937
        %v944 = vpop.permute.xlu0 %943
        %947 = vset.pattern.permute.xlu0 0
        %948 = vperm.xlu0 %947, %v938
        %v949 = vpop.permute.xlu0 %948
        %952 = vset.pattern.permute.xlu0 0
        %953 = vperm.xlu0 %952, %v939
        %v954 = vpop.permute.xlu0 %953
        %957 = vset.pattern.permute.xlu0 0
        %958 = vperm.xlu0 %957, %v940
        %v959 = vpop.permute.xlu0 %958
        %v965 = vunpack.c.l.b16 %v901
        %v966 = vunpack.c.l.b16 %v902
        %v967 = vunpack.c.l.b16 %v903
        %v968 = vunpack.c.l.b16 %v904
        %v969 = vpack.c.b16 %v966, %v965
        %v970 = vpack.c.b16 %v968, %v967
        %vm971 = vcmask 523264
        %v973 = vsel %vm971, %v969, 0
        %v976 = vsel %vm971, %v970, 0
        %978 = vmatprep.subr.bf16.mxu0 %v906
        %979 = vmatpush1.bf16.msra.mxu0 %v905
        %980 = vmatprep.subr.bf16.mxu0 %v914
        %981 = vmatpush1.bf16.msra.mxu0 %v913
        %982 = vmatprep.subr.bf16.mxu0 %v922
        %983 = vmatpush1.bf16.msra.mxu0 %v921
        %984 = vmatprep.subr.bf16.mxu0 %v930
        %985 = vmatpush1.bf16.msra.mxu0 %v929
        %986 = vmatprep.subr.bf16.mxu0 0
        %987 = vmatpush1.bf16.msra.mxu0 0
        %988 = vmatprep.subr.bf16.mxu0 0
        %989 = vmatpush1.bf16.msra.mxu0 0
        %990 = vmatprep.subr.bf16.mxu0 0
        %991 = vmatpush1.bf16.msra.mxu0 0
        %992 = vmatprep.subr.bf16.mxu0 0
        %993 = vmatpush1.bf16.msra.mxu0 0
        %994 = vmatprep.subr.bf16.mxu0 0
        %995 = vmatpush1.bf16.msra.mxu0 0
        %996 = vmatprep.subr.bf16.mxu0 0
        %997 = vmatpush1.bf16.msra.mxu0 0
        %998 = vmatprep.subr.bf16.mxu0 0
        %999 = vmatpush1.bf16.msra.mxu0 0
        %1000 = vmatprep.subr.bf16.mxu0 0
        %1001 = vmatpush1.bf16.msra.mxu0 0
        %1002 = vmatprep.subr.bf16.mxu0 0
        %1003 = vmatpush1.bf16.msra.mxu0 0
        %1004 = vmatprep.subr.bf16.mxu0 0
        %1005 = vmatpush1.bf16.msra.mxu0 0
        %1006 = vmatprep.subr.bf16.mxu0 0
        %1007 = vmatpush1.bf16.msra.mxu0 0
        %1008 = vmatprep.subr.bf16.mxu0 0
        %1009 = vmatpush1.bf16.msra.mxu0 0
        %1010 = vmatprep.mubr.bf16.mxu0 0
        %1011 = vmatmul.mubr.bf16.gmra.mrb[0].mxu0 %v973
        %v1012 = vpop.f32.mrb[0].mxu0
        %v1013 = vadd.f32 %v944, %v1012
        %v1014 = vpop.f32.mrb[0].mxu0
        %v1015 = vadd.f32 %v944, %v1014
        %v1016 = vpop.f32.mrb[0].mxu0
        %v1017 = vadd.f32 %v949, %v1016
        %v1018 = vpop.f32.mrb[0].mxu0
        %v1019 = vadd.f32 %v949, %v1018
        %1020 = vmatprep.mubr.bf16.mxu0 0
        %1021 = vmatmul.mubr.bf16.gmra.mrb[0].mxu0 %v976
        %v1022 = vpop.f32.mrb[0].mxu0
        %v1023 = vadd.f32 %v954, %v1022
        %v1024 = vpop.f32.mrb[0].mxu0
        %v1025 = vadd.f32 %v954, %v1024
        %v1026 = vpop.f32.mrb[0].mxu0
        %v1027 = vadd.f32 %v959, %v1026
        %v1028 = vpop.f32.mrb[0].mxu0
        %v1029 = vadd.f32 %v959, %v1028
        %1030 = vdwg.mxu0
        %1031 = vmatprep.subr.bf16.mxu0 %v908
        %1032 = vmatpush1.bf16.msra.mxu0 %v907
        %1033 = vmatprep.subr.bf16.mxu0 %v916
        %1034 = vmatpush1.bf16.msra.mxu0 %v915
        %1035 = vmatprep.subr.bf16.mxu0 %v924
        %1036 = vmatpush1.bf16.msra.mxu0 %v923
        %1037 = vmatprep.subr.bf16.mxu0 %v932
        %1038 = vmatpush1.bf16.msra.mxu0 %v931
        %1039 = vmatprep.subr.bf16.mxu0 0
        %1040 = vmatpush1.bf16.msra.mxu0 0
        %1041 = vmatprep.subr.bf16.mxu0 0
        %1042 = vmatpush1.bf16.msra.mxu0 0
        %1043 = vmatprep.subr.bf16.mxu0 0
        %1044 = vmatpush1.bf16.msra.mxu0 0
        %1045 = vmatprep.subr.bf16.mxu0 0
        %1046 = vmatpush1.bf16.msra.mxu0 0
        %1047 = vmatprep.subr.bf16.mxu0 0
        %1048 = vmatpush1.bf16.msra.mxu0 0
        %1049 = vmatprep.subr.bf16.mxu0 0
        %1050 = vmatpush1.bf16.msra.mxu0 0
        %1051 = vmatprep.subr.bf16.mxu0 0
        %1052 = vmatpush1.bf16.msra.mxu0 0
        %1053 = vmatprep.subr.bf16.mxu0 0
        %1054 = vmatpush1.bf16.msra.mxu0 0
        %1055 = vmatprep.subr.bf16.mxu0 0
        %1056 = vmatpush1.bf16.msra.mxu0 0
        %1057 = vmatprep.subr.bf16.mxu0 0
        %1058 = vmatpush1.bf16.msra.mxu0 0
        %1059 = vmatprep.subr.bf16.mxu0 0
        %1060 = vmatpush1.bf16.msra.mxu0 0
        %1061 = vmatprep.subr.bf16.mxu0 0
        %1062 = vmatpush1.bf16.msra.mxu0 0
        %1063 = vmatprep.mubr.bf16.mxu0 0
        %1064 = vmatmul.mubr.bf16.gmra.mrb[0].mxu0 %v973
        %v1065 = vpop.f32.mrb[0].mxu0
        %v1066 = vadd.f32 %v944, %v1065
        %v1067 = vpop.f32.mrb[0].mxu0
        %v1068 = vadd.f32 %v944, %v1067
        %v1069 = vpop.f32.mrb[0].mxu0
        %v1070 = vadd.f32 %v949, %v1069
        %v1071 = vpop.f32.mrb[0].mxu0
        %v1072 = vadd.f32 %v949, %v1071
        %1073 = vmatprep.mubr.bf16.mxu0 0
        %1074 = vmatmul.mubr.bf16.gmra.mrb[0].mxu0 %v976
        %v1075 = vpop.f32.mrb[0].mxu0
        %v1076 = vadd.f32 %v954, %v1075
        %v1077 = vpop.f32.mrb[0].mxu0
        %v1078 = vadd.f32 %v954, %v1077
        %v1079 = vpop.f32.mrb[0].mxu0
        %v1080 = vadd.f32 %v959, %v1079
        %v1081 = vpop.f32.mrb[0].mxu0
        %v1082 = vadd.f32 %v959, %v1081
        %1083 = vdwg.mxu0
        %1084 = vmatprep.subr.bf16.mxu0 %v910
        %1085 = vmatpush1.bf16.msra.mxu0 %v909
        %1086 = vmatprep.subr.bf16.mxu0 %v918
        %1087 = vmatpush1.bf16.msra.mxu0 %v917
        %1088 = vmatprep.subr.bf16.mxu0 %v926
        %1089 = vmatpush1.bf16.msra.mxu0 %v925
        %1090 = vmatprep.subr.bf16.mxu0 %v934
        %1091 = vmatpush1.bf16.msra.mxu0 %v933
        %1092 = vmatprep.subr.bf16.mxu0 0
        %1093 = vmatpush1.bf16.msra.mxu0 0
        %1094 = vmatprep.subr.bf16.mxu0 0
        %1095 = vmatpush1.bf16.msra.mxu0 0
        %1096 = vmatprep.subr.bf16.mxu0 0
        %1097 = vmatpush1.bf16.msra.mxu0 0
        %1098 = vmatprep.subr.bf16.mxu0 0
        %1099 = vmatpush1.bf16.msra.mxu0 0
        %1100 = vmatprep.subr.bf16.mxu0 0
        %1101 = vmatpush1.bf16.msra.mxu0 0
        %1102 = vmatprep.subr.bf16.mxu0 0
        %1103 = vmatpush1.bf16.msra.mxu0 0
        %1104 = vmatprep.subr.bf16.mxu0 0
        %1105 = vmatpush1.bf16.msra.mxu0 0
        %1106 = vmatprep.subr.bf16.mxu0 0
        %1107 = vmatpush1.bf16.msra.mxu0 0
        %1108 = vmatprep.subr.bf16.mxu0 0
        %1109 = vmatpush1.bf16.msra.mxu0 0
        %1110 = vmatprep.subr.bf16.mxu0 0
        %1111 = vmatpush1.bf16.msra.mxu0 0
        %1112 = vmatprep.subr.bf16.mxu0 0
        %1113 = vmatpush1.bf16.msra.mxu0 0
        %1114 = vmatprep.subr.bf16.mxu0 0
        %1115 = vmatpush1.bf16.msra.mxu0 0
        %1116 = vmatprep.mubr.bf16.mxu0 0
        %1117 = vmatmul.mubr.bf16.gmra.mrb[0].mxu0 %v973
        %v1118 = vpop.f32.mrb[0].mxu0
        %v1119 = vadd.f32 %v944, %v1118
        %v1120 = vpop.f32.mrb[0].mxu0
        %v1121 = vadd.f32 %v944, %v1120
        %v1122 = vpop.f32.mrb[0].mxu0
        %v1123 = vadd.f32 %v949, %v1122
        %v1124 = vpop.f32.mrb[0].mxu0
        %v1125 = vadd.f32 %v949, %v1124
        %1126 = vmatprep.mubr.bf16.mxu0 0
        %1127 = vmatmul.mubr.bf16.gmra.mrb[0].mxu0 %v976
        %v1128 = vpop.f32.mrb[0].mxu0
        %v1129 = vadd.f32 %v954, %v1128
        %v1130 = vpop.f32.mrb[0].mxu0
        %v1131 = vadd.f32 %v954, %v1130
        %v1132 = vpop.f32.mrb[0].mxu0
        %v1133 = vadd.f32 %v959, %v1132
        %v1134 = vpop.f32.mrb[0].mxu0
        %v1135 = vadd.f32 %v959, %v1134
        %1136 = vdwg.mxu0
        %1137 = vmatprep.subr.bf16.mxu0 %v912
        %1138 = vmatpush1.bf16.msra.mxu0 %v911
        %1139 = vmatprep.subr.bf16.mxu0 %v920
        %1140 = vmatpush1.bf16.msra.mxu0 %v919
        %1141 = vmatprep.subr.bf16.mxu0 %v928
        %1142 = vmatpush1.bf16.msra.mxu0 %v927
        %1143 = vmatprep.subr.bf16.mxu0 %v936
        %1144 = vmatpush1.bf16.msra.mxu0 %v935
        %1145 = vmatprep.subr.bf16.mxu0 0
        %1146 = vmatpush1.bf16.msra.mxu0 0
        %1147 = vmatprep.subr.bf16.mxu0 0
        %1148 = vmatpush1.bf16.msra.mxu0 0
        %1149 = vmatprep.subr.bf16.mxu0 0
        %1150 = vmatpush1.bf16.msra.mxu0 0
        %1151 = vmatprep.subr.bf16.mxu0 0
        %1152 = vmatpush1.bf16.msra.mxu0 0
        %1153 = vmatprep.subr.bf16.mxu0 0
        %1154 = vmatpush1.bf16.msra.mxu0 0
        %1155 = vmatprep.subr.bf16.mxu0 0
        %1156 = vmatpush1.bf16.msra.mxu0 0
        %1157 = vmatprep.subr.bf16.mxu0 0
        %1158 = vmatpush1.bf16.msra.mxu0 0
        %1159 = vmatprep.subr.bf16.mxu0 0
        %1160 = vmatpush1.bf16.msra.mxu0 0
        %1161 = vmatprep.subr.bf16.mxu0 0
        %1162 = vmatpush1.bf16.msra.mxu0 0
        %1163 = vmatprep.subr.bf16.mxu0 0
        %1164 = vmatpush1.bf16.msra.mxu0 0
        %1165 = vmatprep.subr.bf16.mxu0 0
        %1166 = vmatpush1.bf16.msra.mxu0 0
        %1167 = vmatprep.subr.bf16.mxu0 0
        %1168 = vmatpush1.bf16.msra.mxu0 0
        %1169 = vmatprep.mubr.bf16.mxu0 0
        %1170 = vmatmul.mubr.bf16.gmra.mrb[0].mxu0 %v973
        %v1171 = vpop.f32.mrb[0].mxu0
        %v1172 = vadd.f32 %v944, %v1171
        %v1173 = vpop.f32.mrb[0].mxu0
        %v1174 = vadd.f32 %v944, %v1173
        %v1175 = vpop.f32.mrb[0].mxu0
        %v1176 = vadd.f32 %v949, %v1175
        %v1177 = vpop.f32.mrb[0].mxu0
        %v1178 = vadd.f32 %v949, %v1177
        %1179 = vmatprep.mubr.bf16.mxu0 0
        %1180 = vmatmul.mubr.bf16.gmra.mrb[0].mxu0 %v976
        %v1181 = vpop.f32.mrb[0].mxu0
        %v1182 = vadd.f32 %v954, %v1181
        %v1183 = vpop.f32.mrb[0].mxu0
        %v1184 = vadd.f32 %v954, %v1183
        %v1185 = vpop.f32.mrb[0].mxu0
        %v1186 = vadd.f32 %v959, %v1185
        %v1187 = vpop.f32.mrb[0].mxu0
        %v1188 = vadd.f32 %v959, %v1187
        %1189 = vdwg.mxu0
        %v1190 = vmax.f32 %v1013, 0.0
        %v1191 = vmax.f32 %v1015, 0.0
        %v1192 = vmax.f32 %v1066, 0.0
        %v1193 = vmax.f32 %v1068, 0.0
        %v1194 = vmax.f32 %v1119, 0.0
        %v1195 = vmax.f32 %v1121, 0.0
        %v1196 = vmax.f32 %v1172, 0.0
        %v1197 = vmax.f32 %v1174, 0.0
        %v1198 = vmax.f32 %v1017, 0.0
        %v1199 = vmax.f32 %v1019, 0.0
        %v1200 = vmax.f32 %v1070, 0.0
        %v1201 = vmax.f32 %v1072, 0.0
        %v1202 = vmax.f32 %v1123, 0.0
        %v1203 = vmax.f32 %v1125, 0.0
        %v1204 = vmax.f32 %v1176, 0.0
        %v1205 = vmax.f32 %v1178, 0.0
        %v1206 = vmax.f32 %v1023, 0.0
        %v1207 = vmax.f32 %v1025, 0.0
        %v1208 = vmax.f32 %v1076, 0.0
        %v1209 = vmax.f32 %v1078, 0.0
        %v1210 = vmax.f32 %v1129, 0.0
        %v1211 = vmax.f32 %v1131, 0.0
        %v1212 = vmax.f32 %v1182, 0.0
        %v1213 = vmax.f32 %v1184, 0.0
        %v1214 = vmax.f32 %v1027, 0.0
        %v1215 = vmax.f32 %v1029, 0.0
        %v1216 = vmax.f32 %v1080, 0.0
        %v1217 = vmax.f32 %v1082, 0.0
        %v1218 = vmax.f32 %v1133, 0.0
        %v1219 = vmax.f32 %v1135, 0.0
        %v1220 = vmax.f32 %v1186, 0.0
        %v1221 = vmax.f32 %v1188, 0.0
        %1222 = vst [vmem:[%s326] sm:$0xff] %v1190
        %1223 = vst [vmem:[%s326 + $0x8] sm:$0xff] %v1191
        %1224 = vst [vmem:[%s326 + $0x10] sm:$0xff] %v1192
        %1225 = vst [vmem:[%s326 + $0x18] sm:$0xff] %v1193
        %1226 = vst [vmem:[%s326 + $0x20] sm:$0xff] %v1194
        %1227 = vst [vmem:[%s326 + $0x28] sm:$0xff] %v1195
        %1228 = vst [vmem:[%s326 + $0x30] sm:$0xff] %v1196
        %1229 = vst [vmem:[%s326 + $0x38] sm:$0xff] %v1197
        %1230 = vst [vmem:[%s326 + $0x40] sm:$0xff] %v1198
        %1231 = vst [vmem:[%s326 + $0x48] sm:$0xff] %v1199
        %1232 = vst [vmem:[%s326 + $0x50] sm:$0xff] %v1200
        %1233 = vst [vmem:[%s326 + $0x58] sm:$0xff] %v1201
        %1234 = vst [vmem:[%s326 + $0x60] sm:$0xff] %v1202
        %1235 = vst [vmem:[%s326 + $0x68] sm:$0xff] %v1203
        %1236 = vst [vmem:[%s326 + $0x70] sm:$0xff] %v1204
        %1237 = vst [vmem:[%s326 + $0x78] sm:$0xff] %v1205
        %1238 = vst [vmem:[%s326 + $0x80] sm:$0xff] %v1206
        %1239 = vst [vmem:[%s326 + $0x88] sm:$0xff] %v1207
        %1240 = vst [vmem:[%s326 + $0x90] sm:$0xff] %v1208
        %1241 = vst [vmem:[%s326 + $0x98] sm:$0xff] %v1209
        %1242 = vst [vmem:[%s326 + $0xa0] sm:$0xff] %v1210
        %1243 = vst [vmem:[%s326 + $0xa8] sm:$0xff] %v1211
        %1244 = vst [vmem:[%s326 + $0xb0] sm:$0xff] %v1212
        %1245 = vst [vmem:[%s326 + $0xb8] sm:$0xff] %v1213
        %1246 = vst [vmem:[%s326 + $0xc0] sm:$0xff] %v1214
        %1247 = vst [vmem:[%s326 + $0xc8] sm:$0xff] %v1215
        %1248 = vst [vmem:[%s326 + $0xd0] sm:$0xff] %v1216
        %1249 = vst [vmem:[%s326 + $0xd8] sm:$0xff] %v1217
        %1250 = vst [vmem:[%s326 + $0xe0] sm:$0xff] %v1218
        %1251 = vst [vmem:[%s326 + $0xe8] sm:$0xff] %v1219
        %1252 = vst [vmem:[%s326 + $0xf0] sm:$0xff] %v1220
        %1253 = vst [vmem:[%s326 + $0xf8] sm:$0xff] %v1221
        %v1254 = vld [vmem:[%s5] sm:$0xf]
        %v1255 = vpack.c.bf16 %v1198, %v1190
        %v1256 = vpack.c.bf16 %v1199, %v1191
        %v1257 = vpack.c.bf16 %v1200, %v1192
        %v1258 = vpack.c.bf16 %v1201, %v1193
        %v1259 = vpack.c.bf16 %v1202, %v1194
        %v1260 = vpack.c.bf16 %v1203, %v1195
        %v1261 = vpack.c.bf16 %v1204, %v1196
        %v1262 = vpack.c.bf16 %v1205, %v1197
        %v1263 = vpack.c.bf16 %v1214, %v1206
        %v1264 = vpack.c.bf16 %v1215, %v1207
        %v1265 = vpack.c.bf16 %v1216, %v1208
        %v1266 = vpack.c.bf16 %v1217, %v1209
        %v1267 = vpack.c.bf16 %v1218, %v1210
        %v1268 = vpack.c.bf16 %v1219, %v1211
        %v1269 = vpack.c.bf16 %v1220, %v1212
        %v1270 = vpack.c.bf16 %v1221, %v1213
        %v1271 = vld [vmem:[%s6] sm:$0xff]
        %1273 = vset.pattern.permute.xlu0 0
        %1274 = vperm.xlu0 %1273, %v1271
        %v1275 = vpop.permute.xlu0 %1274
        %v1278 = vsel %vm532, %v1254, 0
        %1280 = vmatprep.subr.bf16.mxu0 %v1256
        %1281 = vmatpush1.bf16.msra.mxu0 %v1255
        %1282 = vmatprep.subr.bf16.mxu0 %v1264
        %1283 = vmatpush1.bf16.msra.mxu0 %v1263
        %1284 = vmatprep.subr.bf16.mxu0 0
        %1285 = vmatpush1.bf16.msra.mxu0 0
        %1286 = vmatprep.subr.bf16.mxu0 0
        %1287 = vmatpush1.bf16.msra.mxu0 0
        %1288 = vmatprep.subr.bf16.mxu0 0
        %1289 = vmatpush1.bf16.msra.mxu0 0
        %1290 = vmatprep.subr.bf16.mxu0 0
        %1291 = vmatpush1.bf16.msra.mxu0 0
        %1292 = vmatprep.subr.bf16.mxu0 0
        %1293 = vmatpush1.bf16.msra.mxu0 0
        %1294 = vmatprep.subr.bf16.mxu0 0
        %1295 = vmatpush1.bf16.msra.mxu0 0
        %1296 = vmatprep.subr.bf16.mxu0 0
        %1297 = vmatpush1.bf16.msra.mxu0 0
        %1298 = vmatprep.subr.bf16.mxu0 0
        %1299 = vmatpush1.bf16.msra.mxu0 0
        %1300 = vmatprep.subr.bf16.mxu0 0
        %1301 = vmatpush1.bf16.msra.mxu0 0
        %1302 = vmatprep.subr.bf16.mxu0 0
        %1303 = vmatpush1.bf16.msra.mxu0 0
        %1304 = vmatprep.subr.bf16.mxu0 0
        %1305 = vmatpush1.bf16.msra.mxu0 0
        %1306 = vmatprep.subr.bf16.mxu0 0
        %1307 = vmatpush1.bf16.msra.mxu0 0
        %1308 = vmatprep.subr.bf16.mxu0 0
        %1309 = vmatpush1.bf16.msra.mxu0 0
        %1310 = vmatprep.subr.bf16.mxu0 0
        %1311 = vmatpush1.bf16.msra.mxu0 0
        %1312 = vmatprep.mubr.bf16.mxu0 0
        %1313 = vmatmul.mubr.bf16.gmra.mrb[0].mxu0 %v1278
        %v1314 = vpop.f32.mrb[0].mxu0
        %v1315 = vadd.f32 %v1275, %v1314
        %v1316 = vpop.f32.mrb[0].mxu0
        %v1317 = vadd.f32 %v1275, %v1316
        %v1318 = vpop.f32.mrb[0].mxu0
        %v1319 = vpop.f32.mrb[0].mxu0
        %1320 = vdwg.mxu0
        %1321 = vmatprep.subr.bf16.mxu0 %v1258
        %1322 = vmatpush1.bf16.msra.mxu0 %v1257
        %1323 = vmatprep.subr.bf16.mxu0 %v1266
        %1324 = vmatpush1.bf16.msra.mxu0 %v1265
        %1325 = vmatprep.subr.bf16.mxu0 0
        %1326 = vmatpush1.bf16.msra.mxu0 0
        %1327 = vmatprep.subr.bf16.mxu0 0
        %1328 = vmatpush1.bf16.msra.mxu0 0
        %1329 = vmatprep.subr.bf16.mxu0 0
        %1330 = vmatpush1.bf16.msra.mxu0 0
        %1331 = vmatprep.subr.bf16.mxu0 0
        %1332 = vmatpush1.bf16.msra.mxu0 0
        %1333 = vmatprep.subr.bf16.mxu0 0
        %1334 = vmatpush1.bf16.msra.mxu0 0
        %1335 = vmatprep.subr.bf16.mxu0 0
        %1336 = vmatpush1.bf16.msra.mxu0 0
        %1337 = vmatprep.subr.bf16.mxu0 0
        %1338 = vmatpush1.bf16.msra.mxu0 0
        %1339 = vmatprep.subr.bf16.mxu0 0
        %1340 = vmatpush1.bf16.msra.mxu0 0
        %1341 = vmatprep.subr.bf16.mxu0 0
        %1342 = vmatpush1.bf16.msra.mxu0 0
        %1343 = vmatprep.subr.bf16.mxu0 0
        %1344 = vmatpush1.bf16.msra.mxu0 0
        %1345 = vmatprep.subr.bf16.mxu0 0
        %1346 = vmatpush1.bf16.msra.mxu0 0
        %1347 = vmatprep.subr.bf16.mxu0 0
        %1348 = vmatpush1.bf16.msra.mxu0 0
        %1349 = vmatprep.subr.bf16.mxu0 0
        %1350 = vmatpush1.bf16.msra.mxu0 0
        %1351 = vmatprep.subr.bf16.mxu0 0
        %1352 = vmatpush1.bf16.msra.mxu0 0
        %1353 = vmatprep.mubr.bf16.mxu0 0
        %1354 = vmatmul.mubr.bf16.gmra.mrb[0].mxu0 %v1278
        %v1355 = vpop.f32.mrb[0].mxu0
        %v1356 = vadd.f32 %v1275, %v1355
        %v1357 = vpop.f32.mrb[0].mxu0
        %v1358 = vadd.f32 %v1275, %v1357
        %v1359 = vpop.f32.mrb[0].mxu0
        %v1360 = vpop.f32.mrb[0].mxu0
        %1361 = vdwg.mxu0
        %1362 = vmatprep.subr.bf16.mxu0 %v1260
        %1363 = vmatpush1.bf16.msra.mxu0 %v1259
        %1364 = vmatprep.subr.bf16.mxu0 %v1268
        %1365 = vmatpush1.bf16.msra.mxu0 %v1267
        %1366 = vmatprep.subr.bf16.mxu0 0
        %1367 = vmatpush1.bf16.msra.mxu0 0
        %1368 = vmatprep.subr.bf16.mxu0 0
        %1369 = vmatpush1.bf16.msra.mxu0 0
        %1370 = vmatprep.subr.bf16.mxu0 0
        %1371 = vmatpush1.bf16.msra.mxu0 0
        %1372 = vmatprep.subr.bf16.mxu0 0
        %1373 = vmatpush1.bf16.msra.mxu0 0
        %1374 = vmatprep.subr.bf16.mxu0 0
        %1375 = vmatpush1.bf16.msra.mxu0 0
        %1376 = vmatprep.subr.bf16.mxu0 0
        %1377 = vmatpush1.bf16.msra.mxu0 0
        %1378 = vmatprep.subr.bf16.mxu0 0
        %1379 = vmatpush1.bf16.msra.mxu0 0
        %1380 = vmatprep.subr.bf16.mxu0 0
        %1381 = vmatpush1.bf16.msra.mxu0 0
        %1382 = vmatprep.subr.bf16.mxu0 0
        %1383 = vmatpush1.bf16.msra.mxu0 0
        %1384 = vmatprep.subr.bf16.mxu0 0
        %1385 = vmatpush1.bf16.msra.mxu0 0
        %1386 = vmatprep.subr.bf16.mxu0 0
        %1387 = vmatpush1.bf16.msra.mxu0 0
        %1388 = vmatprep.subr.bf16.mxu0 0
        %1389 = vmatpush1.bf16.msra.mxu0 0
        %1390 = vmatprep.subr.bf16.mxu0 0
        %1391 = vmatpush1.bf16.msra.mxu0 0
        %1392 = vmatprep.subr.bf16.mxu0 0
        %1393 = vmatpush1.bf16.msra.mxu0 0
        %1394 = vmatprep.mubr.bf16.mxu0 0
        %1395 = vmatmul.mubr.bf16.gmra.mrb[0].mxu0 %v1278
        %v1396 = vpop.f32.mrb[0].mxu0
        %v1397 = vadd.f32 %v1275, %v1396
        %v1398 = vpop.f32.mrb[0].mxu0
        %v1399 = vadd.f32 %v1275, %v1398
        %v1400 = vpop.f32.mrb[0].mxu0
        %v1401 = vpop.f32.mrb[0].mxu0
        %1402 = vdwg.mxu0
        %1403 = vmatprep.subr.bf16.mxu0 %v1262
        %1404 = vmatpush1.bf16.msra.mxu0 %v1261
        %1405 = vmatprep.subr.bf16.mxu0 %v1270
        %1406 = vmatpush1.bf16.msra.mxu0 %v1269
        %1407 = vmatprep.subr.bf16.mxu0 0
        %1408 = vmatpush1.bf16.msra.mxu0 0
        %1409 = vmatprep.subr.bf16.mxu0 0
        %1410 = vmatpush1.bf16.msra.mxu0 0
        %1411 = vmatprep.subr.bf16.mxu0 0
        %1412 = vmatpush1.bf16.msra.mxu0 0
        %1413 = vmatprep.subr.bf16.mxu0 0
        %1414 = vmatpush1.bf16.msra.mxu0 0
        %1415 = vmatprep.subr.bf16.mxu0 0
        %1416 = vmatpush1.bf16.msra.mxu0 0
        %1417 = vmatprep.subr.bf16.mxu0 0
        %1418 = vmatpush1.bf16.msra.mxu0 0
        %1419 = vmatprep.subr.bf16.mxu0 0
        %1420 = vmatpush1.bf16.msra.mxu0 0
        %1421 = vmatprep.subr.bf16.mxu0 0
        %1422 = vmatpush1.bf16.msra.mxu0 0
        %1423 = vmatprep.subr.bf16.mxu0 0
        %1424 = vmatpush1.bf16.msra.mxu0 0
        %1425 = vmatprep.subr.bf16.mxu0 0
        %1426 = vmatpush1.bf16.msra.mxu0 0
        %1427 = vmatprep.subr.bf16.mxu0 0
        %1428 = vmatpush1.bf16.msra.mxu0 0
        %1429 = vmatprep.subr.bf16.mxu0 0
        %1430 = vmatpush1.bf16.msra.mxu0 0
        %1431 = vmatprep.subr.bf16.mxu0 0
        %1432 = vmatpush1.bf16.msra.mxu0 0
        %1433 = vmatprep.subr.bf16.mxu0 0
        %1434 = vmatpush1.bf16.msra.mxu0 0
        %1435 = vmatprep.mubr.bf16.mxu0 0
        %1436 = vmatmul.mubr.bf16.gmra.mrb[0].mxu0 %v1278
        %v1437 = vpop.f32.mrb[0].mxu0
        %v1438 = vadd.f32 %v1275, %v1437
        %v1439 = vpop.f32.mrb[0].mxu0
        %v1440 = vadd.f32 %v1275, %v1439
        %v1441 = vpop.f32.mrb[0].mxu0
        %v1442 = vpop.f32.mrb[0].mxu0
        %1443 = vdwg.mxu0
        %1444 = vst [vmem:[%s357] sm:$0xff] %v1315
        %1445 = vst [vmem:[%s357 + $0x8] sm:$0xff] %v1317
        %1446 = vst [vmem:[%s357 + $0x10] sm:$0xff] %v1356
        %1447 = vst [vmem:[%s357 + $0x18] sm:$0xff] %v1358
        %1448 = vst [vmem:[%s357 + $0x20] sm:$0xff] %v1397
        %1449 = vst [vmem:[%s357 + $0x28] sm:$0xff] %v1399
        %1450 = vst [vmem:[%s357 + $0x30] sm:$0xff] %v1438
        %1451 = vst [vmem:[%s357 + $0x38] sm:$0xff] %v1440
        %s1452 = sand.u32 %s199, 1
        %s1453 = scalar_lea.sflag [#allocation3], %s1452
        %s1454 = sand.u32 %s199, 1
        %s1455 = smul.addr %s1454, 256
        %s1456 = scalar_lea.vmem [#allocation2], %s1455
        %s1457 = smul.u32 8, %s28
        %p1458 = scmp.lt.s32.totalorder %s27, 1
        %s1459 = scalar_select %p1458, %s27, 1
        %p1460 = scmp.lt.s32.totalorder %s1457, 7
        %s1461 = scalar_select %p1460, %s1457, 7
        %s1462 = smul.addr %s1459, 8
        %s1463 = sadd.s32 %s1461, %s1462
        %s1464 = smul.addr %s1463, 8
        %s1465 = scalar_lea.vmem %s8, %s1464
        // Predicated region
        $region49: #{vote_layer_forward.1} parent=47 // pred_check
          %p1466 = pneg %p209
        $region50: #{vote_layer_forward.1} parent=47 // pred_check_branch
          %1468 = sbr.rel (%p1466) target = $region52
        $region51: #{vote_layer_forward.1} parent=47 // pred_region
          %s1469 = smul.u32 8, %s28
          %s1471 = ssub.s32 4096, 4096
          %1472 = vsyncadd %s1453, %s1471
          %s1473 = smul.addr %s27, 32
          %s1474 = sadd.s32 %s1469, %s1473
          %s1475 = smul.addr %s1474, 128
          %s1476 = scalar_lea.hbm %s7, %s1475
          %s1477 = sshll.u32 %s1456, 4
          %s1478 = int_to_ptr.vmem [resolvable:$true] %s1477
          %1483 = dma.vmem_to_hbm [thread:$0]  %s1478, 4096, %s1476, %s1453, 1024, 1024, 64
        $region52: #{vote_layer_forward.1} parent=47 // pred_fallthru
          _
        // Predicated region
        $region53: #{vote_layer_forward.1} parent=47 // pred_check
          %p1484 = pneg %p237
        $region54: #{vote_layer_forward.1} parent=47 // pred_check_branch
          %1486 = sbr.rel (%p1484) target = $region56
        $region55: #{vote_layer_forward.1} parent=47 // pred_region
          %s1487 = smul.u32 8, %s28
        $region56: #{vote_layer_forward.1} parent=47 // pred_fallthru
          _
      $region48: #{vote_layer_forward.1} parent=5 // pred_fallthru
        _
      %p1488 = scmp.le.s32.totalorder 2, %s18
      // Predicated region
      $region57: #{vote_layer_forward.1} parent=5 // pred_check
        %p1489 = pneg %p1488
      $region58: #{vote_layer_forward.1} parent=5 // pred_check_branch
        %1491 = sbr.rel (%p1489) target = $region60
      $region59: #{vote_layer_forward.1} parent=5 // pred_region
        %s1492 = ssub.s32 %s18, 2
        // Predicated region
        $region61: #{vote_layer_forward.1} parent=59 // pred_check
          %p1493 = pneg %p215
        $region62: #{vote_layer_forward.1} parent=59 // pred_check_branch
          %1495 = sbr.rel (%p1493) target = $region64
        $region63: #{vote_layer_forward.1} parent=59 // pred_region
          %s1496 = sand.u32 %s200, 1
          %s1497 = scalar_lea.sflag [#allocation3], %s1496
          %s1498 = sand.u32 %s200, 1
          %s1499 = smul.addr %s1498, 256
          %s1500 = scalar_lea.vmem [#allocation2], %s1499
          %1501 = dma.done %s1497, 4096
        $region64: #{vote_layer_forward.1} parent=59 // pred_fallthru
          _
        // Predicated region
        $region65: #{vote_layer_forward.1} parent=59 // pred_check
          %p1502 = pneg %p243
        $region66: #{vote_layer_forward.1} parent=59 // pred_check_branch
          %1504 = sbr.rel (%p1502) target = $region68
        $region67: #{vote_layer_forward.1} parent=59 // pred_region
          %s1505 = smul.u32 8, %s30
          %p1506 = scmp.lt.s32.totalorder %s29, 1
          %s1507 = scalar_select %p1506, %s29, 1
          %p1508 = scmp.lt.s32.totalorder %s1505, 7
          %s1509 = scalar_select %p1508, %s1505, 7
          %s1510 = smul.addr %s1507, 8
          %s1511 = sadd.s32 %s1509, %s1510
          %s1512 = smul.addr %s1511, 8
          %s1513 = scalar_lea.vmem %s8, %s1512
        $region68: #{vote_layer_forward.1} parent=59 // pred_fallthru
          _
      $region60: #{vote_layer_forward.1} parent=5 // pred_fallthru
        _
    $region6: #{vote_layer_forward.1} parent=1 // loop_footer
      %s22 = sadd.s32 1, %s18
    $region7: #{vote_layer_forward.1} parent=1 // loop_footer_branch
      %17 = sbr.rel target = $region3
    $region8: #{vote_layer_forward.1} parent=1 // loop_exit
      _
    %1514 = vsyncpa [#allocation3], 1
    %s1515 = scalar_lea.sflag [#allocation3], 1
    %1516 = vsyncpa %s1515, 1

</llo_original>
